<compile_context>
chip_gen: v7x
topology: tpu7x:2x2x1
jax: 0.10.0
libtpu: 0.0.40
codegen_flags: <defaults>
</compile_context>

<pallas_src>
import functools

import jax
import jax.numpy as jnp
from jax.experimental import pallas as pl
from jax.experimental.pallas import tpu as pltpu


def _round_up(x, m):
    return (x + m - 1) // m * m


def _head_kernel(p_ref, wA_ref, shift_ref, wB_ref, bB_ref, out_ref):
    # p_ref:     (TM, KP)   bf16 im2col patches, K = 9*Cin zero-padded to KP
    # wA_ref:    (KP, C2P)  bf16 conv3x3 weights, BN scale folded, zero-padded
    # shift_ref: (1, C2P)   f32  folded BN shift (beta - mean*scale), zero-padded
    # wB_ref:    (C2P, C3P) bf16 conv1x1 weights, zero-padded
    # bB_ref:    (1, C3P)   f32  conv1x1 bias, zero-padded
    # out_ref:   (TM, C3P)  bf16 lane-dense output slab
    acc = jnp.dot(p_ref[...], wA_ref[...], preferred_element_type=jnp.float32)
    # BatchNorm shift (scale already folded into wA) + LeakyReLU(0.1) -- matches
    # nn.LeakyReLU(0.1) in the PyTorch CNNBlock.
    y = acc + shift_ref[...]
    y = jnp.where(y >= 0, y, 0.1 * y)
    # 1x1 conv = matmul + bias; output last dim is 128-lane aligned -> unmasked vst.
    z = jnp.dot(y.astype(wB_ref.dtype), wB_ref[...],
                preferred_element_type=jnp.float32)
    out_ref[...] = (z + bB_ref[...]).astype(out_ref.dtype)


def _pick_tile_rows(desired, total_rows, kp, c2p, c3p, budget_bytes):
    """Largest TM (halving from `desired`) whose per-step VMEM footprint fits.

    Footprint model (bytes):
      single-buffered weights: wA (kp*c2p bf16) + shift (c2p f32)
                               + wB (c2p*c3p bf16) + bias (c3p f32)
      per row of TM:  2x patch block (bf16, double-buffered)
                    + 2x out block   (bf16, double-buffered)
                    + f32 compute temporaries (acc, y, z)
    Returns (TM, footprint_bytes).
    """
    fixed = kp * c2p * 2 + c2p * 4 + c2p * c3p * 2 + c3p * 4
    per_row = 2 * kp * 2 + 2 * c3p * 2 + c2p * 8 + c3p * 4
    tm = _round_up(min(desired, _round_up(total_rows, 8)), 8)
    while tm > 8 and fixed + tm * per_row > budget_bytes:
        tm = _round_up(tm // 2, 8)
    tm = max(tm, 8)
    return tm, fixed + tm * per_row


@functools.partial(jax.jit, static_argnames=("num_classes", "desired_tile_rows"))
def head_forward(x_nchw, wA, bn_gamma, bn_beta, bn_mean, bn_var, wB, bB,
                 num_classes, desired_tile_rows=512):
    """Pallas implementation of Head.forward.

    x_nchw: (N, Cin, H, W) float32 (PyTorch NCHW convention)
    wA:     (3, 3, Cin, 2*Cin) HWIO conv3x3 weights
    wB:     (2*Cin, 3*(num_classes+5)) conv1x1 weights
    returns (N, 3, H, W, num_classes + 5)
    """
    eps = 1e-5
    N, Cin, H, W = x_nchw.shape
    C2 = wA.shape[-1]
    C3 = wB.shape[-1]
    if C3 != 3 * (num_classes + 5):
        raise ValueError(
            f"wB output dim {C3} != 3*(num_classes+5) = {3 * (num_classes + 5)}")
    if wB.shape[0] != C2:
        raise ValueError(f"wB input dim {wB.shape[0]} != convA output dim {C2}")
    K = 9 * Cin
    HW = H * W
    R = N * HW                                    # total independent rows

    # 128-lane padded channel dims so all vreg layouts / MXU tiles are dense.
    KP = _round_up(K, 128)
    C2P = _round_up(C2, 128)
    C3P = _round_up(C3, 128)

    # Row tile: desired 512, auto-capped so the block footprint also fits v7x
    # (64 MiB physical VMEM).  40 MiB block budget leaves compiler headroom.
    TM, footprint = _pick_tile_rows(desired_tile_rows, R, KP, C2P, C3P,
                                    budget_bytes=40 * 1024 * 1024)
    RP = _round_up(R, TM)

    # --- wrapper-side parameter prep (one-time, outside the hot kernel) -------
    scale = bn_gamma / jnp.sqrt(bn_var + eps)                       # (C2,)
    shift = jnp.pad(bn_beta - bn_mean * scale, (0, C2P - C2)).reshape(1, C2P)
    wA_p = jnp.pad((wA * scale).reshape(K, C2),
                   ((0, KP - K), (0, C2P - C2))).astype(jnp.bfloat16)
    wB_p = jnp.pad(wB, ((0, C2P - C2), (0, C3P - C3))).astype(jnp.bfloat16)
    bB_p = jnp.pad(bB, (0, C3P - C3)).reshape(1, C3P)               # f32

    # --- im2col once in XLA: NCHW -> NHWC -> (N*HW, 9*Cin) bf16 ---------------
    # TODO(synk): for Cin >= 128 the 9x im2col expansion is the HBM bottleneck;
    # switch to 3 row-shifted taps in the wrapper + in-kernel +-1 column shifts
    # (pltpu.roll / halo DMA).  Kept the simple dense path for small Cin.
    x = jnp.transpose(x_nchw, (0, 2, 3, 1))                         # (N, H, W, Cin)
    xp = jnp.pad(x, ((0, 0), (1, 1), (1, 1), (0, 0)))               # (N, H+2, W+2, Cin)
    taps = [xp[:, dy:dy + H, dx:dx + W, :]
            for dy in range(3) for dx in range(3)]
    patches = jnp.concatenate(taps, axis=-1).reshape(R, K)
    patches = jnp.pad(patches, ((0, RP - R), (0, KP - K))).astype(jnp.bfloat16)

    flops = 2 * RP * (KP * C2P + C2P * C3P)
    bytes_accessed = (RP * KP * 2 + KP * C2P * 2 + C2P * C3P * 2
                      + C2P * 4 + C3P * 4 + RP * C3P * 2)
    vmem_limit = int(min(max(footprint + 8 * 1024 * 1024, 16 * 1024 * 1024),
                         96 * 1024 * 1024))

    out = pl.pallas_call(
        _head_kernel,
        out_shape=jax.ShapeDtypeStruct((RP, C3P), jnp.bfloat16),
        grid_spec=pltpu.PrefetchScalarGridSpec(
            num_scalar_prefetch=0,
            grid=(RP // TM,),                     # single flat parallel axis
            in_specs=[
                pl.BlockSpec((TM, KP), lambda t: (t, 0)),
                # Grid-invariant operands: single-buffered (halves resident
                # weight VMEM; significant at large Cin on v7x).
                pl.BlockSpec((KP, C2P), lambda t: (0, 0),
                             pipeline_mode=pl.Buffered(1)),
                pl.BlockSpec((1, C2P), lambda t: (0, 0),
                             pipeline_mode=pl.Buffered(1)),
                pl.BlockSpec((C2P, C3P), lambda t: (0, 0),
                             pipeline_mode=pl.Buffered(1)),
                pl.BlockSpec((1, C3P), lambda t: (0, 0),
                             pipeline_mode=pl.Buffered(1)),
            ],
            out_specs=pl.BlockSpec((TM, C3P), lambda t: (t, 0)),
        ),
        compiler_params=pltpu.CompilerParams(
            dimension_semantics=("parallel",),
            vmem_limit_bytes=vmem_limit),
        cost_estimate=pl.CostEstimate(flops=int(flops), transcendentals=0,
                                      bytes_accessed=int(bytes_accessed)),
    )(patches, wA_p, shift, wB_p, bB_p)

    # Glue: drop row/lane padding, cast back to f32, then reproduce
    # reshape(N, 3, nc+5, H, W).permute(0, 1, 3, 4, 2).
    out = out[:R, :C3].astype(jnp.float32).reshape(N, H, W, 3, num_classes + 5)
    return jnp.transpose(out, (0, 3, 1, 2, 4))


def _reference_forward(x_nchw, wA, bn_gamma, bn_beta, bn_mean, bn_var, wB, bB,
                       num_classes):
    """Pure-JAX f32 reference (lax.conv) for verification."""
    eps = 1e-5
    N, Cin, H, W = x_nchw.shape
    x = jnp.transpose(x_nchw, (0, 2, 3, 1))
    y = jax.lax.conv_general_dilated(
        x, wA, window_strides=(1, 1), padding=((1, 1), (1, 1)),
        dimension_numbers=("NHWC", "HWIO", "NHWC"))
    y = (y - bn_mean) / jnp.sqrt(bn_var + eps) * bn_gamma + bn_beta
    y = jnp.where(y >= 0, y, 0.1 * y)
    z = jnp.einsum("nhwc,cd->nhwd", y, wB) + bB
    z = z.reshape(N, H, W, 3, num_classes + 5)
    return jnp.transpose(z, (0, 3, 1, 2, 4))


if __name__ == "__main__":
    # Small shapes: batch=2, in_channels=4, spatial=16, num_classes=3.
    N, Cin, H, W = 2, 4, 16, 16
    num_classes = 3
    C2 = 2 * Cin
    C3 = 3 * (num_classes + 5)

    key = jax.random.PRNGKey(0)
    k = jax.random.split(key, 8)
    x = jax.random.normal(k[0], (N, Cin, H, W), jnp.float32)
    # Deterministic synthetic parameters (no checkpoint load).
    wA = jax.random.normal(k[1], (3, 3, Cin, C2), jnp.float32) * 0.1
    bn_gamma = 1.0 + 0.1 * jax.random.normal(k[2], (C2,), jnp.float32)
    bn_beta = 0.1 * jax.random.normal(k[3], (C2,), jnp.float32)
    # BatchNorm is applied in inference mode with these running statistics.
    # TODO(synk): PyTorch training-mode BN (batch statistics) is not modeled.
    bn_mean = 0.05 * jax.random.normal(k[4], (C2,), jnp.float32)
    bn_var = jnp.abs(jax.random.normal(k[5], (C2,), jnp.float32)) + 0.5
    wB = jax.random.normal(k[6], (C2, C3), jnp.float32) * 0.1
    bB = 0.1 * jax.random.normal(k[7], (C3,), jnp.float32)

    out = head_forward(x, wA, bn_gamma, bn_beta, bn_mean, bn_var, wB, bB,
                       num_classes=num_classes)
    out = jax.block_until_ready(out)

    ref = _reference_forward(x, wA, bn_gamma, bn_beta, bn_mean, bn_var, wB, bB,
                             num_classes)
    assert out.shape == (N, 3, H, W, num_classes + 5), out.shape
    # Tolerance reflects bf16 MXU operands / bf16 output slab with f32 accumulation.
    assert jnp.allclose(out, ref, atol=3e-2, rtol=3e-2), "mismatch vs reference"

    print("KERNEL_OK")
</pallas_src>

<mosaic_0001>
module attributes {stable_mosaic.version = 11 : i64} {
  func.func @_head_kernel(%arg0: i32, %arg1: memref<512x128xbf16, #tpu.memory_space<vmem>>, %arg2: memref<128x128xbf16, #tpu.memory_space<vmem>>, %arg3: memref<1x128xf32, #tpu.memory_space<vmem>>, %arg4: memref<128x128xbf16, #tpu.memory_space<vmem>>, %arg5: memref<1x128xf32, #tpu.memory_space<vmem>>, %arg6: memref<512x128xbf16, #tpu.memory_space<vmem>>) attributes {dimension_semantics = [#tpu.dimension_semantics<parallel>], iteration_bounds = array<i64: 1>, scalar_prefetch = 0 : i64, scratch_operands = 0 : i64, tpu.core_type = #tpu.core_type<tc>, window_params = [{transform_indices = @transform_0, window_bounds = array<i64: 512, 128>}, {pipeline_mode = #tpu.pipeline_mode<synchronous>, transform_indices = @transform_1, window_bounds = array<i64: 128, 128>}, {pipeline_mode = #tpu.pipeline_mode<synchronous>, transform_indices = @transform_2, window_bounds = array<i64: 1, 128>}, {pipeline_mode = #tpu.pipeline_mode<synchronous>, transform_indices = @transform_3, window_bounds = array<i64: 128, 128>}, {pipeline_mode = #tpu.pipeline_mode<synchronous>, transform_indices = @transform_4, window_bounds = array<i64: 1, 128>}, {transform_indices = @transform_5, window_bounds = array<i64: 512, 128>}]} {
    %c0 = arith.constant 0 : index
    %c0_0 = arith.constant 0 : index
    %0 = vector.load %arg1[%c0, %c0_0] : memref<512x128xbf16, #tpu.memory_space<vmem>>, vector<512x128xbf16>
    %c0_1 = arith.constant 0 : index
    %c0_2 = arith.constant 0 : index
    %1 = vector.load %arg2[%c0_1, %c0_2] : memref<128x128xbf16, #tpu.memory_space<vmem>>, vector<128x128xbf16>
    %cst = arith.constant dense<0.000000e+00> : vector<512x128xf32>
    %2 = tpu.matmul %0, %1, %cst {dimension_numbers = #tpu.dot_dimension_numbers<[1], [0], [0], [1], [0, 0, 1, 1], [], []>} : vector<512x128xbf16>, vector<128x128xbf16>, vector<512x128xf32> -> vector<512x128xf32>
    %c0_3 = arith.constant 0 : index
    %c0_4 = arith.constant 0 : index
    %3 = vector.load %arg3[%c0_3, %c0_4] : memref<1x128xf32, #tpu.memory_space<vmem>>, vector<1x128xf32>
    %4 = vector.broadcast %3 : vector<1x128xf32> to vector<512x128xf32>
    %5 = arith.addf %2, %4 : vector<512x128xf32>
    %cst_5 = arith.constant 0.000000e+00 : f32
    %6 = vector.broadcast %cst_5 : f32 to vector<512x128xf32>
    %7 = arith.cmpf oge, %5, %6 : vector<512x128xf32>
    %cst_6 = arith.constant 1.000000e-01 : f32
    %8 = vector.broadcast %cst_6 : f32 to vector<512x128xf32>
    %9 = arith.mulf %8, %5 : vector<512x128xf32>
    %10 = arith.select %7, %5, %9 : vector<512x128xi1>, vector<512x128xf32>
    %11 = arith.truncf %10 : vector<512x128xf32> to vector<512x128xbf16>
    %c0_7 = arith.constant 0 : index
    %c0_8 = arith.constant 0 : index
    %12 = vector.load %arg4[%c0_7, %c0_8] : memref<128x128xbf16, #tpu.memory_space<vmem>>, vector<128x128xbf16>
    %cst_9 = arith.constant dense<0.000000e+00> : vector<512x128xf32>
    %13 = tpu.matmul %11, %12, %cst_9 {dimension_numbers = #tpu.dot_dimension_numbers<[1], [0], [0], [1], [0, 0, 1, 1], [], []>} : vector<512x128xbf16>, vector<128x128xbf16>, vector<512x128xf32> -> vector<512x128xf32>
    %c0_10 = arith.constant 0 : index
    %c0_11 = arith.constant 0 : index
    %14 = vector.load %arg5[%c0_10, %c0_11] : memref<1x128xf32, #tpu.memory_space<vmem>>, vector<1x128xf32>
    %15 = vector.broadcast %14 : vector<1x128xf32> to vector<512x128xf32>
    %16 = arith.addf %13, %15 : vector<512x128xf32>
    %17 = arith.truncf %16 : vector<512x128xf32> to vector<512x128xbf16>
    %c0_12 = arith.constant 0 : index
    %c0_13 = arith.constant 0 : index
    %18 = vector.load %arg6[%c0_12, %c0_13] : memref<512x128xbf16, #tpu.memory_space<vmem>>, vector<512x128xbf16>
    tpu.vector_store %arg6[%c0_12, %c0_13], %17 {strides = array<i32>} : memref<512x128xbf16, #tpu.memory_space<vmem>>, vector<512x128xbf16>,
    return
  }
  func.func @transform_0(%arg0: i32) -> (i32, i32) {
    %c0_i32 = arith.constant 0 : i32
    %c0_i32_0 = arith.constant 0 : i32
    return %arg0, %c0_i32 : i32, i32
  }
  func.func @transform_1(%arg0: i32) -> (i32, i32) {
    %c0_i32 = arith.constant 0 : i32
    %c0_i32_0 = arith.constant 0 : i32
    %c0_i32_1 = arith.constant 0 : i32
    return %c0_i32, %c0_i32_0 : i32, i32
  }
  func.func @transform_2(%arg0: i32) -> (i32, i32) {
    %c0_i32 = arith.constant 0 : i32
    %c0_i32_0 = arith.constant 0 : i32
    %c0_i32_1 = arith.constant 0 : i32
    return %c0_i32, %c0_i32_0 : i32, i32
  }
  func.func @transform_3(%arg0: i32) -> (i32, i32) {
    %c0_i32 = arith.constant 0 : i32
    %c0_i32_0 = arith.constant 0 : i32
    %c0_i32_1 = arith.constant 0 : i32
    return %c0_i32, %c0_i32_0 : i32, i32
  }
  func.func @transform_4(%arg0: i32) -> (i32, i32) {
    %c0_i32 = arith.constant 0 : i32
    %c0_i32_0 = arith.constant 0 : i32
    %c0_i32_1 = arith.constant 0 : i32
    return %c0_i32, %c0_i32_0 : i32, i32
  }
  func.func @transform_5(%arg0: i32) -> (i32, i32) {
    %c0_i32 = arith.constant 0 : i32
    %c0_i32_0 = arith.constant 0 : i32
    return %arg0, %c0_i32 : i32, i32
  }
}

</mosaic_0001>

<llo_original>
// kernel: head_forward.1
$region0: #{head_forward.1}
  #allocation0 [shape = 'u32[]', space=smem, size = 0x4, offset = 0x4, fixed_abs, tag = 'smem constant byte address 0x4 - core index']
  #allocation1 [shape = 'u32[144,128]{1,0:T(1,128)}', space=vmem, size = 0x12000, scoped, tag = 'internal scratch']
  %s0 = inlined_call_operand.vmem [shape: bf16[512,128], index: 0, kind: input, shape index: {}]
  %s1 = inlined_call_operand.vmem [shape: bf16[128,128], index: 1, kind: input, shape index: {}]
  %s2 = inlined_call_operand.vmem [shape: f32[1,128], index: 2, kind: input, shape index: {}]
  %s3 = inlined_call_operand.vmem [shape: bf16[128,128], index: 3, kind: input, shape index: {}]
  %s4 = inlined_call_operand.vmem [shape: f32[1,128], index: 4, kind: input, shape index: {}]
  %s5 = inlined_call_operand.vmem [shape: bf16[512,128], index: 5, kind: output, shape index: {}]
  %s6 = sld [smem:[#allocation0]]
  $region30: #{head_forward.1} parent=0
    _
  %s8 = ssub.s32 1, %s6
  %s9 = scalar_select 0, %s8, %s6
  // Predicated region
  $region2: #{head_forward.1} parent=0 // pred_check
    _
  $region3: #{head_forward.1} parent=0 // pred_check_branch
    %11 = sbr.rel (0) target = $region5
  $region4: #{head_forward.1} parent=0 // pred_region
    _
  $region5: #{head_forward.1} parent=0 // pred_fallthru
    _
  // Predicated region
  $region6: #{head_forward.1} parent=0 // pred_check
    _
  $region7: #{head_forward.1} parent=0 // pred_check_branch
    %13 = sbr.rel (0) target = $region9
  $region8: #{head_forward.1} parent=0 // pred_region
    _
  $region9: #{head_forward.1} parent=0 // pred_fallthru
    _
  // Predicated region
  $region10: #{head_forward.1} parent=0 // pred_check
    _
  $region11: #{head_forward.1} parent=0 // pred_check_branch
    %15 = sbr.rel (0) target = $region13
  $region12: #{head_forward.1} parent=0 // pred_region
    _
  $region13: #{head_forward.1} parent=0 // pred_fallthru
    _
  // Predicated region
  $region14: #{head_forward.1} parent=0 // pred_check
    _
  $region15: #{head_forward.1} parent=0 // pred_check_branch
    %17 = sbr.rel (0) target = $region17
  $region16: #{head_forward.1} parent=0 // pred_region
    _
  $region17: #{head_forward.1} parent=0 // pred_fallthru
    _
  // Predicated region
  $region18: #{head_forward.1} parent=0 // pred_check
    _
  $region19: #{head_forward.1} parent=0 // pred_check_branch
    %19 = sbr.rel (0) target = $region21
  $region20: #{head_forward.1} parent=0 // pred_region
    _
  $region21: #{head_forward.1} parent=0 // pred_fallthru
    _
  %v21 = vld [vmem:[%s0] sm:$0xf]
  %v22 = vld [vmem:[%s0 + $0x4] sm:$0xf]
  %v23 = vld [vmem:[%s0 + $0x8] sm:$0xf]
  %v24 = vld [vmem:[%s0 + $0xc] sm:$0xf]
  %v25 = vld [vmem:[%s0 + $0x10] sm:$0xf]
  %v26 = vld [vmem:[%s0 + $0x14] sm:$0xf]
  %v27 = vld [vmem:[%s0 + $0x18] sm:$0xf]
  %v28 = vld [vmem:[%s0 + $0x1c] sm:$0xf]
  %v29 = vld [vmem:[%s0 + $0x20] sm:$0xf]
  %v30 = vld [vmem:[%s0 + $0x24] sm:$0xf]
  %v31 = vld [vmem:[%s0 + $0x28] sm:$0xf]
  %v32 = vld [vmem:[%s0 + $0x2c] sm:$0xf]
  %v33 = vld [vmem:[%s0 + $0x30] sm:$0xf]
  %v34 = vld [vmem:[%s0 + $0x34] sm:$0xf]
  %v35 = vld [vmem:[%s0 + $0x38] sm:$0xf]
  %v36 = vld [vmem:[%s0 + $0x3c] sm:$0xf]
  %v37 = vld [vmem:[%s0 + $0x40] sm:$0xf]
  %v38 = vld [vmem:[%s0 + $0x44] sm:$0xf]
  %v39 = vld [vmem:[%s0 + $0x48] sm:$0xf]
  %v40 = vld [vmem:[%s0 + $0x4c] sm:$0xf]
  %v41 = vld [vmem:[%s0 + $0x50] sm:$0xf]
  %v42 = vld [vmem:[%s0 + $0x54] sm:$0xf]
  %v43 = vld [vmem:[%s0 + $0x58] sm:$0xf]
  %v44 = vld [vmem:[%s0 + $0x5c] sm:$0xf]
  %v45 = vld [vmem:[%s0 + $0x60] sm:$0xf]
  %v46 = vld [vmem:[%s0 + $0x64] sm:$0xf]
  %v47 = vld [vmem:[%s0 + $0x68] sm:$0xf]
  %v48 = vld [vmem:[%s0 + $0x6c] sm:$0xf]
  %v49 = vld [vmem:[%s0 + $0x70] sm:$0xf]
  %v50 = vld [vmem:[%s0 + $0x74] sm:$0xf]
  %v51 = vld [vmem:[%s0 + $0x78] sm:$0xf]
  %v52 = vld [vmem:[%s0 + $0x7c] sm:$0xf]
  %v53 = vld [vmem:[%s0 + $0x80] sm:$0xf]
  %v54 = vld [vmem:[%s0 + $0x84] sm:$0xf]
  %v55 = vld [vmem:[%s0 + $0x88] sm:$0xf]
  %v56 = vld [vmem:[%s0 + $0x8c] sm:$0xf]
  %v57 = vld [vmem:[%s0 + $0x90] sm:$0xf]
  %v58 = vld [vmem:[%s0 + $0x94] sm:$0xf]
  %v59 = vld [vmem:[%s0 + $0x98] sm:$0xf]
  %v60 = vld [vmem:[%s0 + $0x9c] sm:$0xf]
  %v61 = vld [vmem:[%s0 + $0xa0] sm:$0xf]
  %v62 = vld [vmem:[%s0 + $0xa4] sm:$0xf]
  %v63 = vld [vmem:[%s0 + $0xa8] sm:$0xf]
  %v64 = vld [vmem:[%s0 + $0xac] sm:$0xf]
  %v65 = vld [vmem:[%s0 + $0xb0] sm:$0xf]
  %v66 = vld [vmem:[%s0 + $0xb4] sm:$0xf]
  %v67 = vld [vmem:[%s0 + $0xb8] sm:$0xf]
  %v68 = vld [vmem:[%s0 + $0xbc] sm:$0xf]
  %v69 = vld [vmem:[%s0 + $0xc0] sm:$0xf]
  %v70 = vld [vmem:[%s0 + $0xc4] sm:$0xf]
  %v71 = vld [vmem:[%s0 + $0xc8] sm:$0xf]
  %v72 = vld [vmem:[%s0 + $0xcc] sm:$0xf]
  %v73 = vld [vmem:[%s0 + $0xd0] sm:$0xf]
  %v74 = vld [vmem:[%s0 + $0xd4] sm:$0xf]
  %v75 = vld [vmem:[%s0 + $0xd8] sm:$0xf]
  %v76 = vld [vmem:[%s0 + $0xdc] sm:$0xf]
  %v77 = vld [vmem:[%s0 + $0xe0] sm:$0xf]
  %v78 = vld [vmem:[%s0 + $0xe4] sm:$0xf]
  %v79 = vld [vmem:[%s0 + $0xe8] sm:$0xf]
  %v80 = vld [vmem:[%s0 + $0xec] sm:$0xf]
  %v81 = vld [vmem:[%s0 + $0xf0] sm:$0xf]
  %v82 = vld [vmem:[%s0 + $0xf4] sm:$0xf]
  %v83 = vld [vmem:[%s0 + $0xf8] sm:$0xf]
  %v84 = vld [vmem:[%s0 + $0xfc] sm:$0xf]
  %v85 = vld [vmem:[%s1] sm:$0xf]
  %v86 = vld [vmem:[%s1 + $0x4] sm:$0xf]
  %v87 = vld [vmem:[%s1 + $0x8] sm:$0xf]
  %v88 = vld [vmem:[%s1 + $0xc] sm:$0xf]
  %v89 = vld [vmem:[%s1 + $0x10] sm:$0xf]
  %v90 = vld [vmem:[%s1 + $0x14] sm:$0xf]
  %v91 = vld [vmem:[%s1 + $0x18] sm:$0xf]
  %v92 = vld [vmem:[%s1 + $0x1c] sm:$0xf]
  %v93 = vld [vmem:[%s1 + $0x20] sm:$0xf]
  %v94 = vld [vmem:[%s1 + $0x24] sm:$0xf]
  %v95 = vld [vmem:[%s1 + $0x28] sm:$0xf]
  %v96 = vld [vmem:[%s1 + $0x2c] sm:$0xf]
  %v97 = vld [vmem:[%s1 + $0x30] sm:$0xf]
  %v98 = vld [vmem:[%s1 + $0x34] sm:$0xf]
  %v99 = vld [vmem:[%s1 + $0x38] sm:$0xf]
  %v100 = vld [vmem:[%s1 + $0x3c] sm:$0xf]
  %v101 = vld [vmem:[%s2] sm:$0x1]
  %v103 = vlaneseq
  %v104 = vshrl.u32 %v103, 7
  %v105 = vsub.s32 0, %v104
  %v106 = vrot.slane %v101, %v105
  %v172 = vunpack.c.l.b16 %v21
  %v173 = vunpack.c.l.b16 %v22
  %v174 = vunpack.c.l.b16 %v23
  %v175 = vunpack.c.l.b16 %v24
  %v176 = vunpack.c.l.b16 %v25
  %v177 = vunpack.c.l.b16 %v26
  %v178 = vunpack.c.l.b16 %v27
  %v179 = vunpack.c.l.b16 %v28
  %v180 = vunpack.c.l.b16 %v29
  %v181 = vunpack.c.l.b16 %v30
  %v182 = vunpack.c.l.b16 %v31
  %v183 = vunpack.c.l.b16 %v32
  %v184 = vunpack.c.l.b16 %v33
  %v185 = vunpack.c.l.b16 %v34
  %v186 = vunpack.c.l.b16 %v35
  %v187 = vunpack.c.l.b16 %v36
  %v188 = vunpack.c.l.b16 %v37
  %v189 = vunpack.c.l.b16 %v38
  %v190 = vunpack.c.l.b16 %v39
  %v191 = vunpack.c.l.b16 %v40
  %v192 = vunpack.c.l.b16 %v41
  %v193 = vunpack.c.l.b16 %v42
  %v194 = vunpack.c.l.b16 %v43
  %v195 = vunpack.c.l.b16 %v44
  %v196 = vunpack.c.l.b16 %v45
  %v197 = vunpack.c.l.b16 %v46
  %v198 = vunpack.c.l.b16 %v47
  %v199 = vunpack.c.l.b16 %v48
  %v200 = vunpack.c.l.b16 %v49
  %v201 = vunpack.c.l.b16 %v50
  %v202 = vunpack.c.l.b16 %v51
  %v203 = vunpack.c.l.b16 %v52
  %v204 = vunpack.c.l.b16 %v53
  %v205 = vunpack.c.l.b16 %v54
  %v206 = vunpack.c.l.b16 %v55
  %v207 = vunpack.c.l.b16 %v56
  %v208 = vunpack.c.l.b16 %v57
  %v209 = vunpack.c.l.b16 %v58
  %v210 = vunpack.c.l.b16 %v59
  %v211 = vunpack.c.l.b16 %v60
  %v212 = vunpack.c.l.b16 %v61
  %v213 = vunpack.c.l.b16 %v62
  %v214 = vunpack.c.l.b16 %v63
  %v215 = vunpack.c.l.b16 %v64
  %v216 = vunpack.c.l.b16 %v65
  %v217 = vunpack.c.l.b16 %v66
  %v218 = vunpack.c.l.b16 %v67
  %v219 = vunpack.c.l.b16 %v68
  %v220 = vunpack.c.l.b16 %v69
  %v221 = vunpack.c.l.b16 %v70
  %v222 = vunpack.c.l.b16 %v71
  %v223 = vunpack.c.l.b16 %v72
  %v224 = vunpack.c.l.b16 %v73
  %v225 = vunpack.c.l.b16 %v74
  %v226 = vunpack.c.l.b16 %v75
  %v227 = vunpack.c.l.b16 %v76
  %v228 = vunpack.c.l.b16 %v77
  %v229 = vunpack.c.l.b16 %v78
  %v230 = vunpack.c.l.b16 %v79
  %v231 = vunpack.c.l.b16 %v80
  %v232 = vunpack.c.l.b16 %v81
  %v233 = vunpack.c.l.b16 %v82
  %v234 = vunpack.c.l.b16 %v83
  %v235 = vunpack.c.l.b16 %v84
  %v236 = vpack.c.b16 %v173, %v172
  %v237 = vpack.c.b16 %v175, %v174
  %v238 = vpack.c.b16 %v177, %v176
  %v239 = vpack.c.b16 %v179, %v178
  %v240 = vpack.c.b16 %v181, %v180
  %v241 = vpack.c.b16 %v183, %v182
  %v242 = vpack.c.b16 %v185, %v184
  %v243 = vpack.c.b16 %v187, %v186
  %v244 = vpack.c.b16 %v189, %v188
  %v245 = vpack.c.b16 %v191, %v190
  %v246 = vpack.c.b16 %v193, %v192
  %v247 = vpack.c.b16 %v195, %v194
  %v248 = vpack.c.b16 %v197, %v196
  %v249 = vpack.c.b16 %v199, %v198
  %v250 = vpack.c.b16 %v201, %v200
  %v251 = vpack.c.b16 %v203, %v202
  %v252 = vpack.c.b16 %v205, %v204
  %v253 = vpack.c.b16 %v207, %v206
  %v254 = vpack.c.b16 %v209, %v208
  %v255 = vpack.c.b16 %v211, %v210
  %v256 = vpack.c.b16 %v213, %v212
  %v257 = vpack.c.b16 %v215, %v214
  %v258 = vpack.c.b16 %v217, %v216
  %v259 = vpack.c.b16 %v219, %v218
  %v260 = vpack.c.b16 %v221, %v220
  %v261 = vpack.c.b16 %v223, %v222
  %v262 = vpack.c.b16 %v225, %v224
  %v263 = vpack.c.b16 %v227, %v226
  %v264 = vpack.c.b16 %v229, %v228
  %v265 = vpack.c.b16 %v231, %v230
  %v266 = vpack.c.b16 %v233, %v232
  %v267 = vpack.c.b16 %v235, %v234
  %v316 = vunpack.c.l.b16 %v85
  %v317 = vunpack.c.l.b16 %v86
  %v318 = vunpack.c.l.b16 %v87
  %v319 = vunpack.c.l.b16 %v88
  %v320 = vunpack.c.l.b16 %v89
  %v321 = vunpack.c.l.b16 %v90
  %v322 = vunpack.c.l.b16 %v91
  %v323 = vunpack.c.l.b16 %v92
  %v324 = vunpack.c.l.b16 %v93
  %v325 = vunpack.c.l.b16 %v94
  %v326 = vunpack.c.l.b16 %v95
  %v327 = vunpack.c.l.b16 %v96
  %v328 = vunpack.c.l.b16 %v97
  %v329 = vunpack.c.l.b16 %v98
  %v330 = vunpack.c.l.b16 %v99
  %v331 = vunpack.c.l.b16 %v100
  %v332 = vpack.c.b16 %v317, %v316
  %v333 = vpack.c.b16 %v319, %v318
  %v334 = vpack.c.b16 %v321, %v320
  %v335 = vpack.c.b16 %v323, %v322
  %v336 = vpack.c.b16 %v325, %v324
  %v337 = vpack.c.b16 %v327, %v326
  %v338 = vpack.c.b16 %v329, %v328
  %v339 = vpack.c.b16 %v331, %v330
  %348 = vmatprep.subr.bf16.mxu0 0
  %349 = vmatpush1.bf16.msra.mxu0 %v332
  %350 = vmatprep.subr.bf16.mxu0 0
  %351 = vmatpush1.bf16.msra.mxu0 %v333
  %352 = vmatprep.subr.bf16.mxu0 0
  %353 = vmatpush1.bf16.msra.mxu0 %v334
  %354 = vmatprep.subr.bf16.mxu0 0
  %355 = vmatpush1.bf16.msra.mxu0 %v335
  %356 = vmatprep.subr.bf16.mxu0 0
  %357 = vmatpush1.bf16.msra.mxu0 %v336
  %358 = vmatprep.subr.bf16.mxu0 0
  %359 = vmatpush1.bf16.msra.mxu0 %v337
  %360 = vmatprep.subr.bf16.mxu0 0
  %361 = vmatpush1.bf16.msra.mxu0 %v338
  %362 = vmatprep.subr.bf16.mxu0 0
  %363 = vmatpush1.bf16.msra.mxu0 %v339
  %364 = vmatprep.subr.bf16.mxu0 0
  %365 = vmatpush1.bf16.msra.mxu0 0
  %366 = vmatprep.subr.bf16.mxu0 0
  %367 = vmatpush1.bf16.msra.mxu0 0
  %368 = vmatprep.subr.bf16.mxu0 0
  %369 = vmatpush1.bf16.msra.mxu0 0
  %370 = vmatprep.subr.bf16.mxu0 0
  %371 = vmatpush1.bf16.msra.mxu0 0
  %372 = vmatprep.subr.bf16.mxu0 0
  %373 = vmatpush1.bf16.msra.mxu0 0
  %374 = vmatprep.subr.bf16.mxu0 0
  %375 = vmatpush1.bf16.msra.mxu0 0
  %376 = vmatprep.subr.bf16.mxu0 0
  %377 = vmatpush1.bf16.msra.mxu0 0
  %378 = vmatprep.subr.bf16.mxu0 0
  %379 = vmatpush1.bf16.msra.mxu0 0
  %380 = vmatprep.mubr.bf16.mxu0 0
  %381 = vmatmul.mubr.bf16.gmra.mrb[0].mxu0 %v236
  %v382 = vpop.f32.mrb[0].mxu0
  %v383 = vadd.f32 %v106, %v382
  %v384 = vpop.f32.mrb[0].mxu0
  %v385 = vpop.f32.mrb[0].mxu0
  %v386 = vadd.f32 %v106, %v385
  %v387 = vpop.f32.mrb[0].mxu0
  %388 = vmatprep.mubr.bf16.mxu0 0
  %389 = vmatmul.mubr.bf16.gmra.mrb[0].mxu0 %v237
  %v390 = vpop.f32.mrb[0].mxu0
  %v391 = vadd.f32 %v106, %v390
  %v392 = vpop.f32.mrb[0].mxu0
  %v393 = vpop.f32.mrb[0].mxu0
  %v394 = vadd.f32 %v106, %v393
  %v395 = vpop.f32.mrb[0].mxu0
  %396 = vmatprep.mubr.bf16.mxu0 0
  %397 = vmatmul.mubr.bf16.gmra.mrb[0].mxu0 %v238
  %v398 = vpop.f32.mrb[0].mxu0
  %v399 = vadd.f32 %v106, %v398
  %v400 = vpop.f32.mrb[0].mxu0
  %v401 = vpop.f32.mrb[0].mxu0
  %v402 = vadd.f32 %v106, %v401
  %v403 = vpop.f32.mrb[0].mxu0
  %404 = vmatprep.mubr.bf16.mxu0 0
  %405 = vmatmul.mubr.bf16.gmra.mrb[0].mxu0 %v239
  %v406 = vpop.f32.mrb[0].mxu0
  %v407 = vadd.f32 %v106, %v406
  %v408 = vpop.f32.mrb[0].mxu0
  %v409 = vpop.f32.mrb[0].mxu0
  %v410 = vadd.f32 %v106, %v409
  %v411 = vpop.f32.mrb[0].mxu0
  %412 = vmatprep.mubr.bf16.mxu0 0
  %413 = vmatmul.mubr.bf16.gmra.mrb[0].mxu0 %v240
  %v414 = vpop.f32.mrb[0].mxu0
  %v415 = vadd.f32 %v106, %v414
  %v416 = vpop.f32.mrb[0].mxu0
  %v417 = vpop.f32.mrb[0].mxu0
  %v418 = vadd.f32 %v106, %v417
  %v419 = vpop.f32.mrb[0].mxu0
  %420 = vmatprep.mubr.bf16.mxu0 0
  %421 = vmatmul.mubr.bf16.gmra.mrb[0].mxu0 %v241
  %v422 = vpop.f32.mrb[0].mxu0
  %v423 = vadd.f32 %v106, %v422
  %v424 = vpop.f32.mrb[0].mxu0
  %v425 = vpop.f32.mrb[0].mxu0
  %v426 = vadd.f32 %v106, %v425
  %v427 = vpop.f32.mrb[0].mxu0
  %428 = vmatprep.mubr.bf16.mxu0 0
  %429 = vmatmul.mubr.bf16.gmra.mrb[0].mxu0 %v242
  %v430 = vpop.f32.mrb[0].mxu0
  %v431 = vadd.f32 %v106, %v430
  %v432 = vpop.f32.mrb[0].mxu0
  %v433 = vpop.f32.mrb[0].mxu0
  %v434 = vadd.f32 %v106, %v433
  %v435 = vpop.f32.mrb[0].mxu0
  %436 = vmatprep.mubr.bf16.mxu0 0
  %437 = vmatmul.mubr.bf16.gmra.mrb[0].mxu0 %v243
  %v438 = vpop.f32.mrb[0].mxu0
  %v439 = vadd.f32 %v106, %v438
  %v440 = vpop.f32.mrb[0].mxu0
  %v441 = vpop.f32.mrb[0].mxu0
  %v442 = vadd.f32 %v106, %v441
  %v443 = vpop.f32.mrb[0].mxu0
  %444 = vmatprep.mubr.bf16.mxu0 0
  %445 = vmatmul.mubr.bf16.gmra.mrb[0].mxu0 %v244
  %v446 = vpop.f32.mrb[0].mxu0
  %v447 = vadd.f32 %v106, %v446
  %v448 = vpop.f32.mrb[0].mxu0
  %v449 = vpop.f32.mrb[0].mxu0
  %v450 = vadd.f32 %v106, %v449
  %v451 = vpop.f32.mrb[0].mxu0
  %452 = vmatprep.mubr.bf16.mxu0 0
  %453 = vmatmul.mubr.bf16.gmra.mrb[0].mxu0 %v245
  %v454 = vpop.f32.mrb[0].mxu0
  %v455 = vadd.f32 %v106, %v454
  %v456 = vpop.f32.mrb[0].mxu0
  %v457 = vpop.f32.mrb[0].mxu0
  %v458 = vadd.f32 %v106, %v457
  %v459 = vpop.f32.mrb[0].mxu0
  %460 = vmatprep.mubr.bf16.mxu0 0
  %461 = vmatmul.mubr.bf16.gmra.mrb[0].mxu0 %v246
  %v462 = vpop.f32.mrb[0].mxu0
  %v463 = vadd.f32 %v106, %v462
  %v464 = vpop.f32.mrb[0].mxu0
  %v465 = vpop.f32.mrb[0].mxu0
  %v466 = vadd.f32 %v106, %v465
  %v467 = vpop.f32.mrb[0].mxu0
  %468 = vmatprep.mubr.bf16.mxu0 0
  %469 = vmatmul.mubr.bf16.gmra.mrb[0].mxu0 %v247
  %v470 = vpop.f32.mrb[0].mxu0
  %v471 = vadd.f32 %v106, %v470
  %v472 = vpop.f32.mrb[0].mxu0
  %v473 = vpop.f32.mrb[0].mxu0
  %v474 = vadd.f32 %v106, %v473
  %v475 = vpop.f32.mrb[0].mxu0
  %476 = vmatprep.mubr.bf16.mxu0 0
  %477 = vmatmul.mubr.bf16.gmra.mrb[0].mxu0 %v248
  %v478 = vpop.f32.mrb[0].mxu0
  %v479 = vadd.f32 %v106, %v478
  %v480 = vpop.f32.mrb[0].mxu0
  %v481 = vpop.f32.mrb[0].mxu0
  %v482 = vadd.f32 %v106, %v481
  %v483 = vpop.f32.mrb[0].mxu0
  %484 = vmatprep.mubr.bf16.mxu0 0
  %485 = vmatmul.mubr.bf16.gmra.mrb[0].mxu0 %v249
  %v486 = vpop.f32.mrb[0].mxu0
  %v487 = vadd.f32 %v106, %v486
  %v488 = vpop.f32.mrb[0].mxu0
  %v489 = vpop.f32.mrb[0].mxu0
  %v490 = vadd.f32 %v106, %v489
  %v491 = vpop.f32.mrb[0].mxu0
  %492 = vmatprep.mubr.bf16.mxu0 0
  %493 = vmatmul.mubr.bf16.gmra.mrb[0].mxu0 %v250
  %v494 = vpop.f32.mrb[0].mxu0
  %v495 = vadd.f32 %v106, %v494
  %v496 = vpop.f32.mrb[0].mxu0
  %v497 = vpop.f32.mrb[0].mxu0
  %v498 = vadd.f32 %v106, %v497
  %v499 = vpop.f32.mrb[0].mxu0
  %500 = vmatprep.mubr.bf16.mxu0 0
  %501 = vmatmul.mubr.bf16.gmra.mrb[0].mxu0 %v251
  %v502 = vpop.f32.mrb[0].mxu0
  %v503 = vadd.f32 %v106, %v502
  %v504 = vpop.f32.mrb[0].mxu0
  %v505 = vpop.f32.mrb[0].mxu0
  %v506 = vadd.f32 %v106, %v505
  %v507 = vpop.f32.mrb[0].mxu0
  %508 = vmatprep.mubr.bf16.mxu0 0
  %509 = vmatmul.mubr.bf16.gmra.mrb[0].mxu0 %v252
  %v510 = vpop.f32.mrb[0].mxu0
  %v511 = vadd.f32 %v106, %v510
  %v512 = vpop.f32.mrb[0].mxu0
  %v513 = vpop.f32.mrb[0].mxu0
  %v514 = vadd.f32 %v106, %v513
  %v515 = vpop.f32.mrb[0].mxu0
  %516 = vmatprep.mubr.bf16.mxu0 0
  %517 = vmatmul.mubr.bf16.gmra.mrb[0].mxu0 %v253
  %v518 = vpop.f32.mrb[0].mxu0
  %v519 = vadd.f32 %v106, %v518
  %v520 = vpop.f32.mrb[0].mxu0
  %v521 = vpop.f32.mrb[0].mxu0
  %v522 = vadd.f32 %v106, %v521
  %v523 = vpop.f32.mrb[0].mxu0
  %524 = vmatprep.mubr.bf16.mxu0 0
  %525 = vmatmul.mubr.bf16.gmra.mrb[0].mxu0 %v254
  %v526 = vpop.f32.mrb[0].mxu0
  %v527 = vadd.f32 %v106, %v526
  %v528 = vpop.f32.mrb[0].mxu0
  %v529 = vpop.f32.mrb[0].mxu0
  %v530 = vadd.f32 %v106, %v529
  %v531 = vpop.f32.mrb[0].mxu0
  %532 = vmatprep.mubr.bf16.mxu0 0
  %533 = vmatmul.mubr.bf16.gmra.mrb[0].mxu0 %v255
  %v534 = vpop.f32.mrb[0].mxu0
  %v535 = vadd.f32 %v106, %v534
  %v536 = vpop.f32.mrb[0].mxu0
  %v537 = vpop.f32.mrb[0].mxu0
  %v538 = vadd.f32 %v106, %v537
  %v539 = vpop.f32.mrb[0].mxu0
  %540 = vmatprep.mubr.bf16.mxu0 0
  %541 = vmatmul.mubr.bf16.gmra.mrb[0].mxu0 %v256
  %v542 = vpop.f32.mrb[0].mxu0
  %v543 = vadd.f32 %v106, %v542
  %v544 = vpop.f32.mrb[0].mxu0
  %v545 = vpop.f32.mrb[0].mxu0
  %v546 = vadd.f32 %v106, %v545
  %v547 = vpop.f32.mrb[0].mxu0
  %548 = vmatprep.mubr.bf16.mxu0 0
  %549 = vmatmul.mubr.bf16.gmra.mrb[0].mxu0 %v257
  %v550 = vpop.f32.mrb[0].mxu0
  %v551 = vadd.f32 %v106, %v550
  %v552 = vpop.f32.mrb[0].mxu0
  %v553 = vpop.f32.mrb[0].mxu0
  %v554 = vadd.f32 %v106, %v553
  %v555 = vpop.f32.mrb[0].mxu0
  %556 = vmatprep.mubr.bf16.mxu0 0
  %557 = vmatmul.mubr.bf16.gmra.mrb[0].mxu0 %v258
  %v558 = vpop.f32.mrb[0].mxu0
  %v559 = vadd.f32 %v106, %v558
  %v560 = vpop.f32.mrb[0].mxu0
  %v561 = vpop.f32.mrb[0].mxu0
  %v562 = vadd.f32 %v106, %v561
  %v563 = vpop.f32.mrb[0].mxu0
  %564 = vmatprep.mubr.bf16.mxu0 0
  %565 = vmatmul.mubr.bf16.gmra.mrb[0].mxu0 %v259
  %v566 = vpop.f32.mrb[0].mxu0
  %v567 = vadd.f32 %v106, %v566
  %v568 = vpop.f32.mrb[0].mxu0
  %v569 = vpop.f32.mrb[0].mxu0
  %v570 = vadd.f32 %v106, %v569
  %v571 = vpop.f32.mrb[0].mxu0
  %572 = vmatprep.mubr.bf16.mxu0 0
  %573 = vmatmul.mubr.bf16.gmra.mrb[0].mxu0 %v260
  %v574 = vpop.f32.mrb[0].mxu0
  %v575 = vadd.f32 %v106, %v574
  %v576 = vpop.f32.mrb[0].mxu0
  %v577 = vpop.f32.mrb[0].mxu0
  %v578 = vadd.f32 %v106, %v577
  %v579 = vpop.f32.mrb[0].mxu0
  %580 = vmatprep.mubr.bf16.mxu0 0
  %581 = vmatmul.mubr.bf16.gmra.mrb[0].mxu0 %v261
  %v582 = vpop.f32.mrb[0].mxu0
  %v583 = vadd.f32 %v106, %v582
  %v584 = vpop.f32.mrb[0].mxu0
  %v585 = vpop.f32.mrb[0].mxu0
  %v586 = vadd.f32 %v106, %v585
  %v587 = vpop.f32.mrb[0].mxu0
  %588 = vmatprep.mubr.bf16.mxu0 0
  %589 = vmatmul.mubr.bf16.gmra.mrb[0].mxu0 %v262
  %v590 = vpop.f32.mrb[0].mxu0
  %v591 = vadd.f32 %v106, %v590
  %v592 = vpop.f32.mrb[0].mxu0
  %v593 = vpop.f32.mrb[0].mxu0
  %v594 = vadd.f32 %v106, %v593
  %v595 = vpop.f32.mrb[0].mxu0
  %596 = vmatprep.mubr.bf16.mxu0 0
  %597 = vmatmul.mubr.bf16.gmra.mrb[0].mxu0 %v263
  %v598 = vpop.f32.mrb[0].mxu0
  %v599 = vadd.f32 %v106, %v598
  %v600 = vpop.f32.mrb[0].mxu0
  %v601 = vpop.f32.mrb[0].mxu0
  %v602 = vadd.f32 %v106, %v601
  %v603 = vpop.f32.mrb[0].mxu0
  %604 = vmatprep.mubr.bf16.mxu0 0
  %605 = vmatmul.mubr.bf16.gmra.mrb[0].mxu0 %v264
  %v606 = vpop.f32.mrb[0].mxu0
  %v607 = vadd.f32 %v106, %v606
  %v608 = vpop.f32.mrb[0].mxu0
  %v609 = vpop.f32.mrb[0].mxu0
  %v610 = vadd.f32 %v106, %v609
  %v611 = vpop.f32.mrb[0].mxu0
  %612 = vmatprep.mubr.bf16.mxu0 0
  %613 = vmatmul.mubr.bf16.gmra.mrb[0].mxu0 %v265
  %v614 = vpop.f32.mrb[0].mxu0
  %v615 = vadd.f32 %v106, %v614
  %v616 = vpop.f32.mrb[0].mxu0
  %v617 = vpop.f32.mrb[0].mxu0
  %v618 = vadd.f32 %v106, %v617
  %v619 = vpop.f32.mrb[0].mxu0
  %620 = vmatprep.mubr.bf16.mxu0 0
  %621 = vmatmul.mubr.bf16.gmra.mrb[0].mxu0 %v266
  %v622 = vpop.f32.mrb[0].mxu0
  %v623 = vadd.f32 %v106, %v622
  %v624 = vpop.f32.mrb[0].mxu0
  %v625 = vpop.f32.mrb[0].mxu0
  %v626 = vadd.f32 %v106, %v625
  %v627 = vpop.f32.mrb[0].mxu0
  %628 = vmatprep.mubr.bf16.mxu0 0
  %629 = vmatmul.mubr.bf16.gmra.mrb[0].mxu0 %v267
  %v630 = vpop.f32.mrb[0].mxu0
  %v631 = vadd.f32 %v106, %v630
  %v632 = vpop.f32.mrb[0].mxu0
  %v633 = vpop.f32.mrb[0].mxu0
  %v634 = vadd.f32 %v106, %v633
  %v635 = vpop.f32.mrb[0].mxu0
  %636 = vdwg.mxu0
  %vm637 = vcmp.ge.f32.partialorder %v383, 0.0
  %vm638 = vcmp.ge.f32.partialorder %v386, 0.0
  %vm639 = vcmp.ge.f32.partialorder %v391, 0.0
  %vm640 = vcmp.ge.f32.partialorder %v394, 0.0
  %vm641 = vcmp.ge.f32.partialorder %v399, 0.0
  %vm642 = vcmp.ge.f32.partialorder %v402, 0.0
  %vm643 = vcmp.ge.f32.partialorder %v407, 0.0
  %vm644 = vcmp.ge.f32.partialorder %v410, 0.0
  %vm645 = vcmp.ge.f32.partialorder %v415, 0.0
  %vm646 = vcmp.ge.f32.partialorder %v418, 0.0
  %vm647 = vcmp.ge.f32.partialorder %v423, 0.0
  %vm648 = vcmp.ge.f32.partialorder %v426, 0.0
  %vm649 = vcmp.ge.f32.partialorder %v431, 0.0
  %vm650 = vcmp.ge.f32.partialorder %v434, 0.0
  %vm651 = vcmp.ge.f32.partialorder %v439, 0.0
  %vm652 = vcmp.ge.f32.partialorder %v442, 0.0
  %vm653 = vcmp.ge.f32.partialorder %v447, 0.0
  %vm654 = vcmp.ge.f32.partialorder %v450, 0.0
  %vm655 = vcmp.ge.f32.partialorder %v455, 0.0
  %vm656 = vcmp.ge.f32.partialorder %v458, 0.0
  %vm657 = vcmp.ge.f32.partialorder %v463, 0.0
  %vm658 = vcmp.ge.f32.partialorder %v466, 0.0
  %vm659 = vcmp.ge.f32.partialorder %v471, 0.0
  %vm660 = vcmp.ge.f32.partialorder %v474, 0.0
  %vm661 = vcmp.ge.f32.partialorder %v479, 0.0
  %vm662 = vcmp.ge.f32.partialorder %v482, 0.0
  %vm663 = vcmp.ge.f32.partialorder %v487, 0.0
  %vm664 = vcmp.ge.f32.partialorder %v490, 0.0
  %vm665 = vcmp.ge.f32.partialorder %v495, 0.0
  %vm666 = vcmp.ge.f32.partialorder %v498, 0.0
  %vm667 = vcmp.ge.f32.partialorder %v503, 0.0
  %vm668 = vcmp.ge.f32.partialorder %v506, 0.0
  %vm669 = vcmp.ge.f32.partialorder %v511, 0.0
  %vm670 = vcmp.ge.f32.partialorder %v514, 0.0
  %vm671 = vcmp.ge.f32.partialorder %v519, 0.0
  %vm672 = vcmp.ge.f32.partialorder %v522, 0.0
  %vm673 = vcmp.ge.f32.partialorder %v527, 0.0
  %vm674 = vcmp.ge.f32.partialorder %v530, 0.0
  %vm675 = vcmp.ge.f32.partialorder %v535, 0.0
  %vm676 = vcmp.ge.f32.partialorder %v538, 0.0
  %vm677 = vcmp.ge.f32.partialorder %v543, 0.0
  %vm678 = vcmp.ge.f32.partialorder %v546, 0.0
  %vm679 = vcmp.ge.f32.partialorder %v551, 0.0
  %vm680 = vcmp.ge.f32.partialorder %v554, 0.0
  %vm681 = vcmp.ge.f32.partialorder %v559, 0.0
  %vm682 = vcmp.ge.f32.partialorder %v562, 0.0
  %vm683 = vcmp.ge.f32.partialorder %v567, 0.0
  %vm684 = vcmp.ge.f32.partialorder %v570, 0.0
  %vm685 = vcmp.ge.f32.partialorder %v575, 0.0
  %vm686 = vcmp.ge.f32.partialorder %v578, 0.0
  %vm687 = vcmp.ge.f32.partialorder %v583, 0.0
  %vm688 = vcmp.ge.f32.partialorder %v586, 0.0
  %vm689 = vcmp.ge.f32.partialorder %v591, 0.0
  %vm690 = vcmp.ge.f32.partialorder %v594, 0.0
  %vm691 = vcmp.ge.f32.partialorder %v599, 0.0
  %vm692 = vcmp.ge.f32.partialorder %v602, 0.0
  %vm693 = vcmp.ge.f32.partialorder %v607, 0.0
  %vm694 = vcmp.ge.f32.partialorder %v610, 0.0
  %vm695 = vcmp.ge.f32.partialorder %v615, 0.0
  %vm696 = vcmp.ge.f32.partialorder %v618, 0.0
  %vm697 = vcmp.ge.f32.partialorder %v623, 0.0
  %vm698 = vcmp.ge.f32.partialorder %v626, 0.0
  %vm699 = vcmp.ge.f32.partialorder %v631, 0.0
  %vm700 = vcmp.ge.f32.partialorder %v634, 0.0
  %v701 = vmul.f32 %v383, 0.1
  %v702 = vmul.f32 %v386, 0.1
  %v703 = vmul.f32 %v391, 0.1
  %v704 = vmul.f32 %v394, 0.1
  %v705 = vmul.f32 %v399, 0.1
  %v706 = vmul.f32 %v402, 0.1
  %v707 = vmul.f32 %v407, 0.1
  %v708 = vmul.f32 %v410, 0.1
  %v709 = vmul.f32 %v415, 0.1
  %v710 = vmul.f32 %v418, 0.1
  %v711 = vmul.f32 %v423, 0.1
  %v712 = vmul.f32 %v426, 0.1
  %v713 = vmul.f32 %v431, 0.1
  %v714 = vmul.f32 %v434, 0.1
  %v715 = vmul.f32 %v439, 0.1
  %v716 = vmul.f32 %v442, 0.1
  %v717 = vmul.f32 %v447, 0.1
  %v718 = vmul.f32 %v450, 0.1
  %v719 = vmul.f32 %v455, 0.1
  %v720 = vmul.f32 %v458, 0.1
  %v721 = vmul.f32 %v463, 0.1
  %v722 = vmul.f32 %v466, 0.1
  %v723 = vmul.f32 %v471, 0.1
  %v724 = vmul.f32 %v474, 0.1
  %v725 = vmul.f32 %v479, 0.1
  %v726 = vmul.f32 %v482, 0.1
  %v727 = vmul.f32 %v487, 0.1
  %v728 = vmul.f32 %v490, 0.1
  %v729 = vmul.f32 %v495, 0.1
  %v730 = vmul.f32 %v498, 0.1
  %v731 = vmul.f32 %v503, 0.1
  %v732 = vmul.f32 %v506, 0.1
  %v733 = vmul.f32 %v511, 0.1
  %v734 = vmul.f32 %v514, 0.1
  %v735 = vmul.f32 %v519, 0.1
  %v736 = vmul.f32 %v522, 0.1
  %v737 = vmul.f32 %v527, 0.1
  %v738 = vmul.f32 %v530, 0.1
  %v739 = vmul.f32 %v535, 0.1
  %v740 = vmul.f32 %v538, 0.1
  %v741 = vmul.f32 %v543, 0.1
  %v742 = vmul.f32 %v546, 0.1
  %v743 = vmul.f32 %v551, 0.1
  %v744 = vmul.f32 %v554, 0.1
  %v745 = vmul.f32 %v559, 0.1
  %v746 = vmul.f32 %v562, 0.1
  %v747 = vmul.f32 %v567, 0.1
  %v748 = vmul.f32 %v570, 0.1
  %v749 = vmul.f32 %v575, 0.1
  %v750 = vmul.f32 %v578, 0.1
  %v751 = vmul.f32 %v583, 0.1
  %v752 = vmul.f32 %v586, 0.1
  %v753 = vmul.f32 %v591, 0.1
  %v754 = vmul.f32 %v594, 0.1
  %v755 = vmul.f32 %v599, 0.1
  %v756 = vmul.f32 %v602, 0.1
  %v757 = vmul.f32 %v607, 0.1
  %v758 = vmul.f32 %v610, 0.1
  %v759 = vmul.f32 %v615, 0.1
  %v760 = vmul.f32 %v618, 0.1
  %v761 = vmul.f32 %v623, 0.1
  %v762 = vmul.f32 %v626, 0.1
  %v763 = vmul.f32 %v631, 0.1
  %v764 = vmul.f32 %v634, 0.1
  %v765 = vsel %vm637, %v383, %v701
  %v766 = vsel %vm638, %v386, %v702
  %v767 = vsel %vm639, %v391, %v703
  %v768 = vsel %vm640, %v394, %v704
  %v769 = vsel %vm641, %v399, %v705
  %v770 = vsel %vm642, %v402, %v706
  %v771 = vsel %vm643, %v407, %v707
  %v772 = vsel %vm644, %v410, %v708
  %v773 = vsel %vm645, %v415, %v709
  %v774 = vsel %vm646, %v418, %v710
  %v775 = vsel %vm647, %v423, %v711
  %v776 = vsel %vm648, %v426, %v712
  %v777 = vsel %vm649, %v431, %v713
  %v778 = vsel %vm650, %v434, %v714
  %v779 = vsel %vm651, %v439, %v715
  %v780 = vsel %vm652, %v442, %v716
  %v781 = vsel %vm653, %v447, %v717
  %v782 = vsel %vm654, %v450, %v718
  %v783 = vsel %vm655, %v455, %v719
  %v784 = vsel %vm656, %v458, %v720
  %v785 = vsel %vm657, %v463, %v721
  %v786 = vsel %vm658, %v466, %v722
  %v787 = vsel %vm659, %v471, %v723
  %v788 = vsel %vm660, %v474, %v724
  %v789 = vsel %vm661, %v479, %v725
  %v790 = vsel %vm662, %v482, %v726
  %v791 = vsel %vm663, %v487, %v727
  %v792 = vsel %vm664, %v490, %v728
  %v793 = vsel %vm665, %v495, %v729
  %v794 = vsel %vm666, %v498, %v730
  %v795 = vsel %vm667, %v503, %v731
  %v796 = vsel %vm668, %v506, %v732
  %v797 = vsel %vm669, %v511, %v733
  %v798 = vsel %vm670, %v514, %v734
  %v799 = vsel %vm671, %v519, %v735
  %v800 = vsel %vm672, %v522, %v736
  %v801 = vsel %vm673, %v527, %v737
  %v802 = vsel %vm674, %v530, %v738
  %v803 = vsel %vm675, %v535, %v739
  %v804 = vsel %vm676, %v538, %v740
  %v805 = vsel %vm677, %v543, %v741
  %v806 = vsel %vm678, %v546, %v742
  %v807 = vsel %vm679, %v551, %v743
  %v808 = vsel %vm680, %v554, %v744
  %v809 = vsel %vm681, %v559, %v745
  %v810 = vsel %vm682, %v562, %v746
  %v811 = vsel %vm683, %v567, %v747
  %v812 = vsel %vm684, %v570, %v748
  %v813 = vsel %vm685, %v575, %v749
  %v814 = vsel %vm686, %v578, %v750
  %v815 = vsel %vm687, %v583, %v751
  %v816 = vsel %vm688, %v586, %v752
  %v817 = vsel %vm689, %v591, %v753
  %v818 = vsel %vm690, %v594, %v754
  %v819 = vsel %vm691, %v599, %v755
  %v820 = vsel %vm692, %v602, %v756
  %v821 = vsel %vm693, %v607, %v757
  %v822 = vsel %vm694, %v610, %v758
  %v823 = vsel %vm695, %v615, %v759
  %v824 = vsel %vm696, %v618, %v760
  %v825 = vsel %vm697, %v623, %v761
  %v826 = vsel %vm698, %v626, %v762
  %v827 = vsel %vm699, %v631, %v763
  %v828 = vsel %vm700, %v634, %v764
  %v829 = vpack.c.bf16 %v766, %v765
  %v830 = vpack.c.bf16 %v768, %v767
  %v831 = vpack.c.bf16 %v770, %v769
  %v832 = vpack.c.bf16 %v772, %v771
  %v833 = vpack.c.bf16 %v774, %v773
  %v834 = vpack.c.bf16 %v776, %v775
  %v835 = vpack.c.bf16 %v778, %v777
  %v836 = vpack.c.bf16 %v780, %v779
  %v837 = vpack.c.bf16 %v782, %v781
  %v838 = vpack.c.bf16 %v784, %v783
  %v839 = vpack.c.bf16 %v786, %v785
  %v840 = vpack.c.bf16 %v788, %v787
  %v841 = vpack.c.bf16 %v790, %v789
  %v842 = vpack.c.bf16 %v792, %v791
  %v843 = vpack.c.bf16 %v794, %v793
  %v844 = vpack.c.bf16 %v796, %v795
  %v845 = vpack.c.bf16 %v798, %v797
  %v846 = vpack.c.bf16 %v800, %v799
  %v847 = vpack.c.bf16 %v802, %v801
  %v848 = vpack.c.bf16 %v804, %v803
  %v849 = vpack.c.bf16 %v806, %v805
  %v850 = vpack.c.bf16 %v808, %v807
  %v851 = vpack.c.bf16 %v810, %v809
  %v852 = vpack.c.bf16 %v812, %v811
  %v853 = vpack.c.bf16 %v814, %v813
  %v854 = vpack.c.bf16 %v816, %v815
  %v855 = vpack.c.bf16 %v818, %v817
  %v856 = vpack.c.bf16 %v820, %v819
  %v857 = vpack.c.bf16 %v822, %v821
  %v858 = vpack.c.bf16 %v824, %v823
  %v859 = vpack.c.bf16 %v826, %v825
  %v860 = vpack.c.bf16 %v828, %v827
  %v861 = vld [vmem:[%s3] sm:$0xf]
  %v862 = vld [vmem:[%s3 + $0x4] sm:$0xf]
  %v863 = vld [vmem:[%s3 + $0x8] sm:$0xf]
  %v864 = vld [vmem:[%s3 + $0xc] sm:$0xf]
  %v865 = vld [vmem:[%s3 + $0x10] sm:$0xf]
  %v866 = vld [vmem:[%s3 + $0x14] sm:$0xf]
  %v867 = vld [vmem:[%s3 + $0x18] sm:$0xf]
  %v868 = vld [vmem:[%s3 + $0x1c] sm:$0xf]
  %v869 = vld [vmem:[%s3 + $0x20] sm:$0xf]
  %v870 = vld [vmem:[%s3 + $0x24] sm:$0xf]
  %v871 = vld [vmem:[%s3 + $0x28] sm:$0xf]
  %v872 = vld [vmem:[%s3 + $0x2c] sm:$0xf]
  %v873 = vld [vmem:[%s3 + $0x30] sm:$0xf]
  %v874 = vld [vmem:[%s3 + $0x34] sm:$0xf]
  %v875 = vld [vmem:[%s3 + $0x38] sm:$0xf]
  %v876 = vld [vmem:[%s3 + $0x3c] sm:$0xf]
  %v877 = vld [vmem:[%s4] sm:$0x1]
  %v879 = vlaneseq
  %v880 = vshrl.u32 %v879, 7
  %v881 = vsub.s32 0, %v880
  %v882 = vrot.slane %v877, %v881
  %v900 = vunpack.c.l.b16 %v861
  %v901 = vunpack.c.l.b16 %v862
  %v902 = vunpack.c.l.b16 %v863
  %v903 = vunpack.c.l.b16 %v864
  %v904 = vunpack.c.l.b16 %v865
  %v905 = vunpack.c.l.b16 %v866
  %v906 = vunpack.c.l.b16 %v867
  %v907 = vunpack.c.l.b16 %v868
  %v908 = vunpack.c.l.b16 %v869
  %v909 = vunpack.c.l.b16 %v870
  %v910 = vunpack.c.l.b16 %v871
  %v911 = vunpack.c.l.b16 %v872
  %v912 = vunpack.c.l.b16 %v873
  %v913 = vunpack.c.l.b16 %v874
  %v914 = vunpack.c.l.b16 %v875
  %v915 = vunpack.c.l.b16 %v876
  %v916 = vpack.c.b16 %v901, %v900
  %v917 = vpack.c.b16 %v903, %v902
  %v918 = vpack.c.b16 %v905, %v904
  %v919 = vpack.c.b16 %v907, %v906
  %v920 = vpack.c.b16 %v909, %v908
  %v921 = vpack.c.b16 %v911, %v910
  %v922 = vpack.c.b16 %v913, %v912
  %v923 = vpack.c.b16 %v915, %v914
  %932 = vmatprep.subr.bf16.mxu0 0
  %933 = vmatpush1.bf16.msra.mxu0 %v916
  %934 = vmatprep.subr.bf16.mxu0 0
  %935 = vmatpush1.bf16.msra.mxu0 %v917
  %936 = vmatprep.subr.bf16.mxu0 0
  %937 = vmatpush1.bf16.msra.mxu0 %v918
  %938 = vmatprep.subr.bf16.mxu0 0
  %939 = vmatpush1.bf16.msra.mxu0 %v919
  %940 = vmatprep.subr.bf16.mxu0 0
  %941 = vmatpush1.bf16.msra.mxu0 %v920
  %942 = vmatprep.subr.bf16.mxu0 0
  %943 = vmatpush1.bf16.msra.mxu0 %v921
  %944 = vmatprep.subr.bf16.mxu0 0
  %945 = vmatpush1.bf16.msra.mxu0 %v922
  %946 = vmatprep.subr.bf16.mxu0 0
  %947 = vmatpush1.bf16.msra.mxu0 %v923
  %948 = vmatprep.subr.bf16.mxu0 0
  %949 = vmatpush1.bf16.msra.mxu0 0
  %950 = vmatprep.subr.bf16.mxu0 0
  %951 = vmatpush1.bf16.msra.mxu0 0
  %952 = vmatprep.subr.bf16.mxu0 0
  %953 = vmatpush1.bf16.msra.mxu0 0
  %954 = vmatprep.subr.bf16.mxu0 0
  %955 = vmatpush1.bf16.msra.mxu0 0
  %956 = vmatprep.subr.bf16.mxu0 0
  %957 = vmatpush1.bf16.msra.mxu0 0
  %958 = vmatprep.subr.bf16.mxu0 0
  %959 = vmatpush1.bf16.msra.mxu0 0
  %960 = vmatprep.subr.bf16.mxu0 0
  %961 = vmatpush1.bf16.msra.mxu0 0
  %962 = vmatprep.subr.bf16.mxu0 0
  %963 = vmatpush1.bf16.msra.mxu0 0
  %964 = vmatprep.mubr.bf16.mxu0 0
  %965 = vmatmul.mubr.bf16.gmra.mrb[0].mxu0 %v829
  %v966 = vpop.f32.mrb[0].mxu0
  %v967 = vadd.f32 %v882, %v966
  %v968 = vpop.f32.mrb[0].mxu0
  %v969 = vpop.f32.mrb[0].mxu0
  %v970 = vadd.f32 %v882, %v969
  %v971 = vpop.f32.mrb[0].mxu0
  %972 = vmatprep.mubr.bf16.mxu0 0
  %973 = vmatmul.mubr.bf16.gmra.mrb[0].mxu0 %v830
  %v974 = vpop.f32.mrb[0].mxu0
  %v975 = vadd.f32 %v882, %v974
  %v976 = vpop.f32.mrb[0].mxu0
  %v977 = vpop.f32.mrb[0].mxu0
  %v978 = vadd.f32 %v882, %v977
  %v979 = vpop.f32.mrb[0].mxu0
  %980 = vmatprep.mubr.bf16.mxu0 0
  %981 = vmatmul.mubr.bf16.gmra.mrb[0].mxu0 %v831
  %v982 = vpop.f32.mrb[0].mxu0
  %v983 = vadd.f32 %v882, %v982
  %v984 = vpop.f32.mrb[0].mxu0
  %v985 = vpop.f32.mrb[0].mxu0
  %v986 = vadd.f32 %v882, %v985
  %v987 = vpop.f32.mrb[0].mxu0
  %988 = vmatprep.mubr.bf16.mxu0 0
  %989 = vmatmul.mubr.bf16.gmra.mrb[0].mxu0 %v832
  %v990 = vpop.f32.mrb[0].mxu0
  %v991 = vadd.f32 %v882, %v990
  %v992 = vpop.f32.mrb[0].mxu0
  %v993 = vpop.f32.mrb[0].mxu0
  %v994 = vadd.f32 %v882, %v993
  %v995 = vpop.f32.mrb[0].mxu0
  %996 = vmatprep.mubr.bf16.mxu0 0
  %997 = vmatmul.mubr.bf16.gmra.mrb[0].mxu0 %v833
  %v998 = vpop.f32.mrb[0].mxu0
  %v999 = vadd.f32 %v882, %v998
  %v1000 = vpop.f32.mrb[0].mxu0
  %v1001 = vpop.f32.mrb[0].mxu0
  %v1002 = vadd.f32 %v882, %v1001
  %v1003 = vpop.f32.mrb[0].mxu0
  %1004 = vmatprep.mubr.bf16.mxu0 0
  %1005 = vmatmul.mubr.bf16.gmra.mrb[0].mxu0 %v834
  %v1006 = vpop.f32.mrb[0].mxu0
  %v1007 = vadd.f32 %v882, %v1006
  %v1008 = vpop.f32.mrb[0].mxu0
  %v1009 = vpop.f32.mrb[0].mxu0
  %v1010 = vadd.f32 %v882, %v1009
  %v1011 = vpop.f32.mrb[0].mxu0
  %1012 = vmatprep.mubr.bf16.mxu0 0
  %1013 = vmatmul.mubr.bf16.gmra.mrb[0].mxu0 %v835
  %v1014 = vpop.f32.mrb[0].mxu0
  %v1015 = vadd.f32 %v882, %v1014
  %v1016 = vpop.f32.mrb[0].mxu0
  %v1017 = vpop.f32.mrb[0].mxu0
  %v1018 = vadd.f32 %v882, %v1017
  %v1019 = vpop.f32.mrb[0].mxu0
  %1020 = vmatprep.mubr.bf16.mxu0 0
  %1021 = vmatmul.mubr.bf16.gmra.mrb[0].mxu0 %v836
  %v1022 = vpop.f32.mrb[0].mxu0
  %v1023 = vadd.f32 %v882, %v1022
  %v1024 = vpop.f32.mrb[0].mxu0
  %v1025 = vpop.f32.mrb[0].mxu0
  %v1026 = vadd.f32 %v882, %v1025
  %v1027 = vpop.f32.mrb[0].mxu0
  %1028 = vmatprep.mubr.bf16.mxu0 0
  %1029 = vmatmul.mubr.bf16.gmra.mrb[0].mxu0 %v837
  %v1030 = vpop.f32.mrb[0].mxu0
  %v1031 = vadd.f32 %v882, %v1030
  %v1032 = vpop.f32.mrb[0].mxu0
  %v1033 = vpop.f32.mrb[0].mxu0
  %v1034 = vadd.f32 %v882, %v1033
  %v1035 = vpop.f32.mrb[0].mxu0
  %1036 = vmatprep.mubr.bf16.mxu0 0
  %1037 = vmatmul.mubr.bf16.gmra.mrb[0].mxu0 %v838
  %v1038 = vpop.f32.mrb[0].mxu0
  %v1039 = vadd.f32 %v882, %v1038
  %v1040 = vpop.f32.mrb[0].mxu0
  %v1041 = vpop.f32.mrb[0].mxu0
  %v1042 = vadd.f32 %v882, %v1041
  %v1043 = vpop.f32.mrb[0].mxu0
  %1044 = vmatprep.mubr.bf16.mxu0 0
  %1045 = vmatmul.mubr.bf16.gmra.mrb[0].mxu0 %v839
  %v1046 = vpop.f32.mrb[0].mxu0
  %v1047 = vadd.f32 %v882, %v1046
  %v1048 = vpop.f32.mrb[0].mxu0
  %v1049 = vpop.f32.mrb[0].mxu0
  %v1050 = vadd.f32 %v882, %v1049
  %v1051 = vpop.f32.mrb[0].mxu0
  %1052 = vmatprep.mubr.bf16.mxu0 0
  %1053 = vmatmul.mubr.bf16.gmra.mrb[0].mxu0 %v840
  %v1054 = vpop.f32.mrb[0].mxu0
  %v1055 = vadd.f32 %v882, %v1054
  %v1056 = vpop.f32.mrb[0].mxu0
  %v1057 = vpop.f32.mrb[0].mxu0
  %v1058 = vadd.f32 %v882, %v1057
  %v1059 = vpop.f32.mrb[0].mxu0
  %1060 = vmatprep.mubr.bf16.mxu0 0
  %1061 = vmatmul.mubr.bf16.gmra.mrb[0].mxu0 %v841
  %v1062 = vpop.f32.mrb[0].mxu0
  %v1063 = vadd.f32 %v882, %v1062
  %v1064 = vpop.f32.mrb[0].mxu0
  %v1065 = vpop.f32.mrb[0].mxu0
  %v1066 = vadd.f32 %v882, %v1065
  %v1067 = vpop.f32.mrb[0].mxu0
  %1068 = vmatprep.mubr.bf16.mxu0 0
  %1069 = vmatmul.mubr.bf16.gmra.mrb[0].mxu0 %v842
  %v1070 = vpop.f32.mrb[0].mxu0
  %v1071 = vadd.f32 %v882, %v1070
  %v1072 = vpop.f32.mrb[0].mxu0
  %v1073 = vpop.f32.mrb[0].mxu0
  %v1074 = vadd.f32 %v882, %v1073
  %v1075 = vpop.f32.mrb[0].mxu0
  %1076 = vmatprep.mubr.bf16.mxu0 0
  %1077 = vmatmul.mubr.bf16.gmra.mrb[0].mxu0 %v843
  %v1078 = vpop.f32.mrb[0].mxu0
  %v1079 = vadd.f32 %v882, %v1078
  %v1080 = vpop.f32.mrb[0].mxu0
  %v1081 = vpop.f32.mrb[0].mxu0
  %v1082 = vadd.f32 %v882, %v1081
  %v1083 = vpop.f32.mrb[0].mxu0
  %1084 = vmatprep.mubr.bf16.mxu0 0
  %1085 = vmatmul.mubr.bf16.gmra.mrb[0].mxu0 %v844
  %v1086 = vpop.f32.mrb[0].mxu0
  %v1087 = vadd.f32 %v882, %v1086
  %v1088 = vpop.f32.mrb[0].mxu0
  %v1089 = vpop.f32.mrb[0].mxu0
  %v1090 = vadd.f32 %v882, %v1089
  %v1091 = vpop.f32.mrb[0].mxu0
  %1092 = vmatprep.mubr.bf16.mxu0 0
  %1093 = vmatmul.mubr.bf16.gmra.mrb[0].mxu0 %v845
  %v1094 = vpop.f32.mrb[0].mxu0
  %v1095 = vadd.f32 %v882, %v1094
  %v1096 = vpop.f32.mrb[0].mxu0
  %v1097 = vpop.f32.mrb[0].mxu0
  %v1098 = vadd.f32 %v882, %v1097
  %v1099 = vpop.f32.mrb[0].mxu0
  %1100 = vmatprep.mubr.bf16.mxu0 0
  %1101 = vmatmul.mubr.bf16.gmra.mrb[0].mxu0 %v846
  %v1102 = vpop.f32.mrb[0].mxu0
  %v1103 = vadd.f32 %v882, %v1102
  %v1104 = vpop.f32.mrb[0].mxu0
  %v1105 = vpop.f32.mrb[0].mxu0
  %v1106 = vadd.f32 %v882, %v1105
  %v1107 = vpop.f32.mrb[0].mxu0
  %1108 = vmatprep.mubr.bf16.mxu0 0
  %1109 = vmatmul.mubr.bf16.gmra.mrb[0].mxu0 %v847
  %v1110 = vpop.f32.mrb[0].mxu0
  %v1111 = vadd.f32 %v882, %v1110
  %v1112 = vpop.f32.mrb[0].mxu0
  %v1113 = vpop.f32.mrb[0].mxu0
  %v1114 = vadd.f32 %v882, %v1113
  %v1115 = vpop.f32.mrb[0].mxu0
  %1116 = vmatprep.mubr.bf16.mxu0 0
  %1117 = vmatmul.mubr.bf16.gmra.mrb[0].mxu0 %v848
  %v1118 = vpop.f32.mrb[0].mxu0
  %v1119 = vadd.f32 %v882, %v1118
  %v1120 = vpop.f32.mrb[0].mxu0
  %v1121 = vpop.f32.mrb[0].mxu0
  %v1122 = vadd.f32 %v882, %v1121
  %v1123 = vpop.f32.mrb[0].mxu0
  %1124 = vmatprep.mubr.bf16.mxu0 0
  %1125 = vmatmul.mubr.bf16.gmra.mrb[0].mxu0 %v849
  %v1126 = vpop.f32.mrb[0].mxu0
  %v1127 = vadd.f32 %v882, %v1126
  %v1128 = vpop.f32.mrb[0].mxu0
  %v1129 = vpop.f32.mrb[0].mxu0
  %v1130 = vadd.f32 %v882, %v1129
  %v1131 = vpop.f32.mrb[0].mxu0
  %1132 = vmatprep.mubr.bf16.mxu0 0
  %1133 = vmatmul.mubr.bf16.gmra.mrb[0].mxu0 %v850
  %v1134 = vpop.f32.mrb[0].mxu0
  %v1135 = vadd.f32 %v882, %v1134
  %v1136 = vpop.f32.mrb[0].mxu0
  %v1137 = vpop.f32.mrb[0].mxu0
  %v1138 = vadd.f32 %v882, %v1137
  %v1139 = vpop.f32.mrb[0].mxu0
  %1140 = vmatprep.mubr.bf16.mxu0 0
  %1141 = vmatmul.mubr.bf16.gmra.mrb[0].mxu0 %v851
  %v1142 = vpop.f32.mrb[0].mxu0
  %v1143 = vadd.f32 %v882, %v1142
  %v1144 = vpop.f32.mrb[0].mxu0
  %v1145 = vpop.f32.mrb[0].mxu0
  %v1146 = vadd.f32 %v882, %v1145
  %v1147 = vpop.f32.mrb[0].mxu0
  %1148 = vmatprep.mubr.bf16.mxu0 0
  %1149 = vmatmul.mubr.bf16.gmra.mrb[0].mxu0 %v852
  %v1150 = vpop.f32.mrb[0].mxu0
  %v1151 = vadd.f32 %v882, %v1150
  %v1152 = vpop.f32.mrb[0].mxu0
  %v1153 = vpop.f32.mrb[0].mxu0
  %v1154 = vadd.f32 %v882, %v1153
  %v1155 = vpop.f32.mrb[0].mxu0
  %1156 = vmatprep.mubr.bf16.mxu0 0
  %1157 = vmatmul.mubr.bf16.gmra.mrb[0].mxu0 %v853
  %v1158 = vpop.f32.mrb[0].mxu0
  %v1159 = vadd.f32 %v882, %v1158
  %v1160 = vpop.f32.mrb[0].mxu0
  %v1161 = vpop.f32.mrb[0].mxu0
  %v1162 = vadd.f32 %v882, %v1161
  %v1163 = vpop.f32.mrb[0].mxu0
  %1164 = vmatprep.mubr.bf16.mxu0 0
  %1165 = vmatmul.mubr.bf16.gmra.mrb[0].mxu0 %v854
  %v1166 = vpop.f32.mrb[0].mxu0
  %v1167 = vadd.f32 %v882, %v1166
  %v1168 = vpop.f32.mrb[0].mxu0
  %v1169 = vpop.f32.mrb[0].mxu0
  %v1170 = vadd.f32 %v882, %v1169
  %v1171 = vpop.f32.mrb[0].mxu0
  %1172 = vmatprep.mubr.bf16.mxu0 0
  %1173 = vmatmul.mubr.bf16.gmra.mrb[0].mxu0 %v855
  %v1174 = vpop.f32.mrb[0].mxu0
  %v1175 = vadd.f32 %v882, %v1174
  %v1176 = vpop.f32.mrb[0].mxu0
  %v1177 = vpop.f32.mrb[0].mxu0
  %v1178 = vadd.f32 %v882, %v1177
  %v1179 = vpop.f32.mrb[0].mxu0
  %1180 = vmatprep.mubr.bf16.mxu0 0
  %1181 = vmatmul.mubr.bf16.gmra.mrb[0].mxu0 %v856
  %v1182 = vpop.f32.mrb[0].mxu0
  %v1183 = vadd.f32 %v882, %v1182
  %v1184 = vpop.f32.mrb[0].mxu0
  %v1185 = vpop.f32.mrb[0].mxu0
  %v1186 = vadd.f32 %v882, %v1185
  %v1187 = vpop.f32.mrb[0].mxu0
  %1188 = vmatprep.mubr.bf16.mxu0 0
  %1189 = vmatmul.mubr.bf16.gmra.mrb[0].mxu0 %v857
  %v1190 = vpop.f32.mrb[0].mxu0
  %v1191 = vadd.f32 %v882, %v1190
  %v1192 = vpop.f32.mrb[0].mxu0
  %v1193 = vpop.f32.mrb[0].mxu0
  %v1194 = vadd.f32 %v882, %v1193
  %v1195 = vpop.f32.mrb[0].mxu0
  %1196 = vmatprep.mubr.bf16.mxu0 0
  %1197 = vmatmul.mubr.bf16.gmra.mrb[0].mxu0 %v858
  %v1198 = vpop.f32.mrb[0].mxu0
  %v1199 = vadd.f32 %v882, %v1198
  %v1200 = vpop.f32.mrb[0].mxu0
  %v1201 = vpop.f32.mrb[0].mxu0
  %v1202 = vadd.f32 %v882, %v1201
  %v1203 = vpop.f32.mrb[0].mxu0
  %1204 = vmatprep.mubr.bf16.mxu0 0
  %1205 = vmatmul.mubr.bf16.gmra.mrb[0].mxu0 %v859
  %v1206 = vpop.f32.mrb[0].mxu0
  %v1207 = vadd.f32 %v882, %v1206
  %v1208 = vpop.f32.mrb[0].mxu0
  %v1209 = vpop.f32.mrb[0].mxu0
  %v1210 = vadd.f32 %v882, %v1209
  %v1211 = vpop.f32.mrb[0].mxu0
  %1212 = vmatprep.mubr.bf16.mxu0 0
  %1213 = vmatmul.mubr.bf16.gmra.mrb[0].mxu0 %v860
  %v1214 = vpop.f32.mrb[0].mxu0
  %v1215 = vadd.f32 %v882, %v1214
  %v1216 = vpop.f32.mrb[0].mxu0
  %v1217 = vpop.f32.mrb[0].mxu0
  %v1218 = vadd.f32 %v882, %v1217
  %v1219 = vpop.f32.mrb[0].mxu0
  %1220 = vdwg.mxu0
  %v1221 = vpack.c.bf16 %v970, %v967
  %v1222 = vpack.c.bf16 %v978, %v975
  %v1223 = vpack.c.bf16 %v986, %v983
  %v1224 = vpack.c.bf16 %v994, %v991
  %v1225 = vpack.c.bf16 %v1002, %v999
  %v1226 = vpack.c.bf16 %v1010, %v1007
  %v1227 = vpack.c.bf16 %v1018, %v1015
  %v1228 = vpack.c.bf16 %v1026, %v1023
  %v1229 = vpack.c.bf16 %v1034, %v1031
  %v1230 = vpack.c.bf16 %v1042, %v1039
  %v1231 = vpack.c.bf16 %v1050, %v1047
  %v1232 = vpack.c.bf16 %v1058, %v1055
  %v1233 = vpack.c.bf16 %v1066, %v1063
  %v1234 = vpack.c.bf16 %v1074, %v1071
  %v1235 = vpack.c.bf16 %v1082, %v1079
  %v1236 = vpack.c.bf16 %v1090, %v1087
  %v1237 = vpack.c.bf16 %v1098, %v1095
  %v1238 = vpack.c.bf16 %v1106, %v1103
  %v1239 = vpack.c.bf16 %v1114, %v1111
  %v1240 = vpack.c.bf16 %v1122, %v1119
  %v1241 = vpack.c.bf16 %v1130, %v1127
  %v1242 = vpack.c.bf16 %v1138, %v1135
  %v1243 = vpack.c.bf16 %v1146, %v1143
  %v1244 = vpack.c.bf16 %v1154, %v1151
  %v1245 = vpack.c.bf16 %v1162, %v1159
  %v1246 = vpack.c.bf16 %v1170, %v1167
  %v1247 = vpack.c.bf16 %v1178, %v1175
  %v1248 = vpack.c.bf16 %v1186, %v1183
  %v1249 = vpack.c.bf16 %v1194, %v1191
  %v1250 = vpack.c.bf16 %v1202, %v1199
  %v1251 = vpack.c.bf16 %v1210, %v1207
  %v1252 = vpack.c.bf16 %v1218, %v1215
  %v1285 = vunpack.c.l.b16 %v1221
  %v1286 = vunpack.c.h.b16 %v1221
  %v1287 = vunpack.c.l.b16 %v1222
  %v1288 = vunpack.c.h.b16 %v1222
  %v1289 = vunpack.c.l.b16 %v1223
  %v1290 = vunpack.c.h.b16 %v1223
  %v1291 = vunpack.c.l.b16 %v1224
  %v1292 = vunpack.c.h.b16 %v1224
  %v1293 = vunpack.c.l.b16 %v1225
  %v1294 = vunpack.c.h.b16 %v1225
  %v1295 = vunpack.c.l.b16 %v1226
  %v1296 = vunpack.c.h.b16 %v1226
  %v1297 = vunpack.c.l.b16 %v1227
  %v1298 = vunpack.c.h.b16 %v1227
  %v1299 = vunpack.c.l.b16 %v1228
  %v1300 = vunpack.c.h.b16 %v1228
  %v1301 = vunpack.c.l.b16 %v1229
  %v1302 = vunpack.c.h.b16 %v1229
  %v1303 = vunpack.c.l.b16 %v1230
  %v1304 = vunpack.c.h.b16 %v1230
  %v1305 = vunpack.c.l.b16 %v1231
  %v1306 = vunpack.c.h.b16 %v1231
  %v1307 = vunpack.c.l.b16 %v1232
  %v1308 = vunpack.c.h.b16 %v1232
  %v1309 = vunpack.c.l.b16 %v1233
  %v1310 = vunpack.c.h.b16 %v1233
  %v1311 = vunpack.c.l.b16 %v1234
  %v1312 = vunpack.c.h.b16 %v1234
  %v1313 = vunpack.c.l.b16 %v1235
  %v1314 = vunpack.c.h.b16 %v1235
  %v1315 = vunpack.c.l.b16 %v1236
  %v1316 = vunpack.c.h.b16 %v1236
  %v1317 = vunpack.c.l.b16 %v1237
  %v1318 = vunpack.c.h.b16 %v1237
  %v1319 = vunpack.c.l.b16 %v1238
  %v1320 = vunpack.c.h.b16 %v1238
  %v1321 = vunpack.c.l.b16 %v1239
  %v1322 = vunpack.c.h.b16 %v1239
  %v1323 = vunpack.c.l.b16 %v1240
  %v1324 = vunpack.c.h.b16 %v1240
  %v1325 = vunpack.c.l.b16 %v1241
  %v1326 = vunpack.c.h.b16 %v1241
  %v1327 = vunpack.c.l.b16 %v1242
  %v1328 = vunpack.c.h.b16 %v1242
  %v1329 = vunpack.c.l.b16 %v1243
  %v1330 = vunpack.c.h.b16 %v1243
  %v1331 = vunpack.c.l.b16 %v1244
  %v1332 = vunpack.c.h.b16 %v1244
  %v1333 = vunpack.c.l.b16 %v1245
  %v1334 = vunpack.c.h.b16 %v1245
  %v1335 = vunpack.c.l.b16 %v1246
  %v1336 = vunpack.c.h.b16 %v1246
  %v1337 = vunpack.c.l.b16 %v1247
  %v1338 = vunpack.c.h.b16 %v1247
  %v1339 = vunpack.c.l.b16 %v1248
  %v1340 = vunpack.c.h.b16 %v1248
  %v1341 = vunpack.c.l.b16 %v1249
  %v1342 = vunpack.c.h.b16 %v1249
  %v1343 = vunpack.c.l.b16 %v1250
  %v1344 = vunpack.c.h.b16 %v1250
  %v1345 = vunpack.c.l.b16 %v1251
  %v1346 = vunpack.c.h.b16 %v1251
  %v1347 = vunpack.c.l.b16 %v1252
  %v1348 = vunpack.c.h.b16 %v1252
  %v1349 = vpack.c.b16 %v1285, %v1285
  %v1350 = vpack.c.b16 %v1286, %v1286
  %v1351 = vpack.c.b16 %v1287, %v1287
  %v1352 = vpack.c.b16 %v1288, %v1288
  %v1353 = vpack.c.b16 %v1289, %v1289
  %v1354 = vpack.c.b16 %v1290, %v1290
  %v1355 = vpack.c.b16 %v1291, %v1291
  %v1356 = vpack.c.b16 %v1292, %v1292
  %v1357 = vpack.c.b16 %v1293, %v1293
  %v1358 = vpack.c.b16 %v1294, %v1294
  %v1359 = vpack.c.b16 %v1295, %v1295
  %v1360 = vpack.c.b16 %v1296, %v1296
  %v1361 = vpack.c.b16 %v1297, %v1297
  %v1362 = vpack.c.b16 %v1298, %v1298
  %v1363 = vpack.c.b16 %v1299, %v1299
  %v1364 = vpack.c.b16 %v1300, %v1300
  %v1365 = vpack.c.b16 %v1301, %v1301
  %v1366 = vpack.c.b16 %v1302, %v1302
  %v1367 = vpack.c.b16 %v1303, %v1303
  %v1368 = vpack.c.b16 %v1304, %v1304
  %v1369 = vpack.c.b16 %v1305, %v1305
  %v1370 = vpack.c.b16 %v1306, %v1306
  %v1371 = vpack.c.b16 %v1307, %v1307
  %v1372 = vpack.c.b16 %v1308, %v1308
  %v1373 = vpack.c.b16 %v1309, %v1309
  %v1374 = vpack.c.b16 %v1310, %v1310
  %v1375 = vpack.c.b16 %v1311, %v1311
  %v1376 = vpack.c.b16 %v1312, %v1312
  %v1377 = vpack.c.b16 %v1313, %v1313
  %v1378 = vpack.c.b16 %v1314, %v1314
  %v1379 = vpack.c.b16 %v1315, %v1315
  %v1380 = vpack.c.b16 %v1316, %v1316
  %v1381 = vpack.c.b16 %v1317, %v1317
  %v1382 = vpack.c.b16 %v1318, %v1318
  %v1383 = vpack.c.b16 %v1319, %v1319
  %v1384 = vpack.c.b16 %v1320, %v1320
  %v1385 = vpack.c.b16 %v1321, %v1321
  %v1386 = vpack.c.b16 %v1322, %v1322
  %v1387 = vpack.c.b16 %v1323, %v1323
  %v1388 = vpack.c.b16 %v1324, %v1324
  %v1389 = vpack.c.b16 %v1325, %v1325
  %v1390 = vpack.c.b16 %v1326, %v1326
  %v1391 = vpack.c.b16 %v1327, %v1327
  %v1392 = vpack.c.b16 %v1328, %v1328
  %v1393 = vpack.c.b16 %v1329, %v1329
  %v1394 = vpack.c.b16 %v1330, %v1330
  %v1395 = vpack.c.b16 %v1331, %v1331
  %v1396 = vpack.c.b16 %v1332, %v1332
  %v1397 = vpack.c.b16 %v1333, %v1333
  %v1398 = vpack.c.b16 %v1334, %v1334
  %v1399 = vpack.c.b16 %v1335, %v1335
  %v1400 = vpack.c.b16 %v1336, %v1336
  %v1401 = vpack.c.b16 %v1337, %v1337
  %v1402 = vpack.c.b16 %v1338, %v1338
  %v1403 = vpack.c.b16 %v1339, %v1339
  %v1404 = vpack.c.b16 %v1340, %v1340
  %v1405 = vpack.c.b16 %v1341, %v1341
  %v1406 = vpack.c.b16 %v1342, %v1342
  %v1407 = vpack.c.b16 %v1343, %v1343
  %v1408 = vpack.c.b16 %v1344, %v1344
  %v1409 = vpack.c.b16 %v1345, %v1345
  %v1410 = vpack.c.b16 %v1346, %v1346
  %v1411 = vpack.c.b16 %v1347, %v1347
  %v1412 = vpack.c.b16 %v1348, %v1348
  %1477 = vst [vmem:[%s5] sm:$0xf] %v1349
  %1478 = vst [vmem:[%s5 + $0x4] sm:$0xf] %v1350
  %1479 = vst [vmem:[%s5 + $0x8] sm:$0xf] %v1351
  %1480 = vst [vmem:[%s5 + $0xc] sm:$0xf] %v1352
  %1481 = vst [vmem:[%s5 + $0x10] sm:$0xf] %v1353
  %1482 = vst [vmem:[%s5 + $0x14] sm:$0xf] %v1354
  %1483 = vst [vmem:[%s5 + $0x18] sm:$0xf] %v1355
  %1484 = vst [vmem:[%s5 + $0x1c] sm:$0xf] %v1356
  %1485 = vst [vmem:[%s5 + $0x20] sm:$0xf] %v1357
  %1486 = vst [vmem:[%s5 + $0x24] sm:$0xf] %v1358
  %1487 = vst [vmem:[%s5 + $0x28] sm:$0xf] %v1359
  %1488 = vst [vmem:[%s5 + $0x2c] sm:$0xf] %v1360
  %1489 = vst [vmem:[%s5 + $0x30] sm:$0xf] %v1361
  %1490 = vst [vmem:[%s5 + $0x34] sm:$0xf] %v1362
  %1491 = vst [vmem:[%s5 + $0x38] sm:$0xf] %v1363
  %1492 = vst [vmem:[%s5 + $0x3c] sm:$0xf] %v1364
  %1493 = vst [vmem:[%s5 + $0x40] sm:$0xf] %v1365
  %1494 = vst [vmem:[%s5 + $0x44] sm:$0xf] %v1366
  %1495 = vst [vmem:[%s5 + $0x48] sm:$0xf] %v1367
  %1496 = vst [vmem:[%s5 + $0x4c] sm:$0xf] %v1368
  %1497 = vst [vmem:[%s5 + $0x50] sm:$0xf] %v1369
  %1498 = vst [vmem:[%s5 + $0x54] sm:$0xf] %v1370
  %1499 = vst [vmem:[%s5 + $0x58] sm:$0xf] %v1371
  %1500 = vst [vmem:[%s5 + $0x5c] sm:$0xf] %v1372
  %1501 = vst [vmem:[%s5 + $0x60] sm:$0xf] %v1373
  %1502 = vst [vmem:[%s5 + $0x64] sm:$0xf] %v1374
  %1503 = vst [vmem:[%s5 + $0x68] sm:$0xf] %v1375
  %1504 = vst [vmem:[%s5 + $0x6c] sm:$0xf] %v1376
  %1505 = vst [vmem:[%s5 + $0x70] sm:$0xf] %v1377
  %1506 = vst [vmem:[%s5 + $0x74] sm:$0xf] %v1378
  %1507 = vst [vmem:[%s5 + $0x78] sm:$0xf] %v1379
  %1508 = vst [vmem:[%s5 + $0x7c] sm:$0xf] %v1380
  %1509 = vst [vmem:[%s5 + $0x80] sm:$0xf] %v1381
  %1510 = vst [vmem:[%s5 + $0x84] sm:$0xf] %v1382
  %1511 = vst [vmem:[%s5 + $0x88] sm:$0xf] %v1383
  %1512 = vst [vmem:[%s5 + $0x8c] sm:$0xf] %v1384
  %1513 = vst [vmem:[%s5 + $0x90] sm:$0xf] %v1385
  %1514 = vst [vmem:[%s5 + $0x94] sm:$0xf] %v1386
  %1515 = vst [vmem:[%s5 + $0x98] sm:$0xf] %v1387
  %1516 = vst [vmem:[%s5 + $0x9c] sm:$0xf] %v1388
  %1517 = vst [vmem:[%s5 + $0xa0] sm:$0xf] %v1389
  %1518 = vst [vmem:[%s5 + $0xa4] sm:$0xf] %v1390
  %1519 = vst [vmem:[%s5 + $0xa8] sm:$0xf] %v1391
  %1520 = vst [vmem:[%s5 + $0xac] sm:$0xf] %v1392
  %1521 = vst [vmem:[%s5 + $0xb0] sm:$0xf] %v1393
  %1522 = vst [vmem:[%s5 + $0xb4] sm:$0xf] %v1394
  %1523 = vst [vmem:[%s5 + $0xb8] sm:$0xf] %v1395
  %1524 = vst [vmem:[%s5 + $0xbc] sm:$0xf] %v1396
  %1525 = vst [vmem:[%s5 + $0xc0] sm:$0xf] %v1397
  %1526 = vst [vmem:[%s5 + $0xc4] sm:$0xf] %v1398
  %1527 = vst [vmem:[%s5 + $0xc8] sm:$0xf] %v1399
  %1528 = vst [vmem:[%s5 + $0xcc] sm:$0xf] %v1400
  %1529 = vst [vmem:[%s5 + $0xd0] sm:$0xf] %v1401
  %1530 = vst [vmem:[%s5 + $0xd4] sm:$0xf] %v1402
  %1531 = vst [vmem:[%s5 + $0xd8] sm:$0xf] %v1403
  %1532 = vst [vmem:[%s5 + $0xdc] sm:$0xf] %v1404
  %1533 = vst [vmem:[%s5 + $0xe0] sm:$0xf] %v1405
  %1534 = vst [vmem:[%s5 + $0xe4] sm:$0xf] %v1406
  %1535 = vst [vmem:[%s5 + $0xe8] sm:$0xf] %v1407
  %1536 = vst [vmem:[%s5 + $0xec] sm:$0xf] %v1408
  %1537 = vst [vmem:[%s5 + $0xf0] sm:$0xf] %v1409
  %1538 = vst [vmem:[%s5 + $0xf4] sm:$0xf] %v1410
  %1539 = vst [vmem:[%s5 + $0xf8] sm:$0xf] %v1411
  %1540 = vst [vmem:[%s5 + $0xfc] sm:$0xf] %v1412
  // Predicated region
  $region22: #{head_forward.1} parent=0 // pred_check
    _
  $region23: #{head_forward.1} parent=0 // pred_check_branch
    %1542 = sbr.rel (0) target = $region25
  $region24: #{head_forward.1} parent=0 // pred_region
    _
  $region25: #{head_forward.1} parent=0 // pred_fallthru
    _
  // Predicated region
  $region26: #{head_forward.1} parent=0 // pred_check
    _
  $region27: #{head_forward.1} parent=0 // pred_check_branch
    %1544 = sbr.rel (0) target = $region29
  $region28: #{head_forward.1} parent=0 // pred_region
    _
  $region29: #{head_forward.1} parent=0 // pred_fallthru
    _

</llo_original>
